<compile_context>
chip_gen: v7x
topology: tpu7x:2x2x1
jax: 0.10.0
libtpu: 0.0.40
codegen_flags: <defaults>
</compile_context>

<pallas_src>
import jax
import jax.numpy as jnp
from jax.experimental import pallas as pl
from jax.experimental.pallas import tpu as pltpu


def nnue_kernel(x_ref, w1_ref, b1_ref, w2_ref, b2_ref, w3_ref, b3_ref, o_ref):
    # x tile: [TB, 768], possibly int8 (binary NNUE features) -> cast to f32.
    x = x_ref[...].astype(jnp.float32)

    # sparse_linear: 768 -> 16, clamp to [0, 1]   (MXU)
    h1 = jnp.dot(x, w1_ref[...], preferred_element_type=jnp.float32)
    h1 = jnp.clip(h1 + b1_ref[...], 0.0, 1.0)          # bias [1,16] broadcast

    # linear1: 16 -> 16, clamp to [0, 1]           (MXU)
    h2 = jnp.dot(h1, w2_ref[...], preferred_element_type=jnp.float32)
    h2 = jnp.clip(h2 + b2_ref[...], 0.0, 1.0)

    # linear2: 16 -> 1 as VPU multiply + lane reduce (avoid N=1 MXU matmul),
    # then scale by 1/400 and sigmoid (exp on the EUP slot).
    z = jnp.sum(h2 * w3_ref[...], axis=-1, keepdims=True)   # [TB, 1]
    z = (z + b3_ref[...]) * (1.0 / 400.0)
    o_ref[...] = 1.0 / (1.0 + jnp.exp(-z))


def simple_nnue_forward(x, params, *, block_rows=2048):
    """Forward pass.

    x: [B, 768], float32 (general) or int8 (binary NNUE features; 4x less DMA).
    params: dict with w1[768,16], b1[1,16], w2[16,16], b2[1,16], w3[1,16], b3[1,1].
    block_rows: batch tile size; must be a multiple of 32 (int8 sublane tiling).
    """
    assert block_rows % 32 == 0, "block_rows must be a multiple of 32"
    B = x.shape[0]
    w1, b1 = params["w1"], params["b1"]
    w2, b2 = params["w2"], params["b2"]
    w3, b3 = params["w3"], params["b3"]

    # Pad the batch to a tile multiple; padded (zero) rows are sliced off below.
    num_tiles = pl.cdiv(B, block_rows)
    b_pad = num_tiles * block_rows
    if b_pad != B:
        x = jnp.pad(x, ((0, b_pad - B), (0, 0)))

    out = pl.pallas_call(
        nnue_kernel,
        out_shape=jax.ShapeDtypeStruct((b_pad, 1), jnp.float32),
        grid_spec=pltpu.PrefetchScalarGridSpec(
            num_scalar_prefetch=0,
            grid=(num_tiles,),
            in_specs=[
                # x: batch-tiled, double-buffered by the Pallas pipeline.
                pl.BlockSpec((block_rows, 768), lambda i: (i, 0)),
                # Weights/biases: constant block index -> fetched once, resident.
                pl.BlockSpec(w1.shape, lambda i: (0, 0)),
                pl.BlockSpec(b1.shape, lambda i: (0, 0)),
                pl.BlockSpec(w2.shape, lambda i: (0, 0)),
                pl.BlockSpec(b2.shape, lambda i: (0, 0)),
                pl.BlockSpec(w3.shape, lambda i: (0, 0)),
                pl.BlockSpec(b3.shape, lambda i: (0, 0)),
            ],
            out_specs=pl.BlockSpec((block_rows, 1), lambda i: (i, 0)),
        ),
        compiler_params=pltpu.CompilerParams(
            dimension_semantics=("parallel",),          # megacore-shardable batch
            vmem_limit_bytes=32 * 1024 * 1024,
        ),
    )(x, w1, b1, w2, b2, w3, b3)

    return out[:B]


def init_params(key):
    """nn.Linear-style init; weights stored pre-transposed [in, out]."""
    k1, k2, k3, k4, k5, k6 = jax.random.split(key, 6)

    def uni(k, shape, fan_in):
        bound = 1.0 / jnp.sqrt(fan_in)
        return jax.random.uniform(k, shape, jnp.float32, -bound, bound)

    return {
        "w1": uni(k1, (768, 16), 768.0),
        "b1": uni(k2, (1, 16), 768.0),
        "w2": uni(k3, (16, 16), 16.0),
        "b2": uni(k4, (1, 16), 16.0),
        "w3": uni(k5, (1, 16), 16.0),   # row vector of the 16->1 layer
        "b3": uni(k6, (1, 1), 16.0),
    }


def reference_forward(x, p):
    x = x.astype(jnp.float32)
    h1 = jnp.clip(x @ p["w1"] + p["b1"], 0.0, 1.0)
    h2 = jnp.clip(h1 @ p["w2"] + p["b2"], 0.0, 1.0)
    z = (h2 @ p["w3"].T + p["b3"]) * (1.0 / 400.0)
    return 1.0 / (1.0 + jnp.exp(-z))


if __name__ == "__main__":
    key = jax.random.PRNGKey(0)
    kx, kp = jax.random.split(key)

    B = 8
    # NNUE inputs are sparse binary feature planes of length 768; ship as int8.
    x = jax.random.bernoulli(kx, p=0.05, shape=(B, 768)).astype(jnp.int8)

    params = init_params(kp)

    # Small tile for the tiny demo batch (production default is block_rows=2048;
    # the code path — padding, tiling, pipelining — is identical).
    out = simple_nnue_forward(x, params, block_rows=256)
    out = jax.block_until_ready(out)

    ref = reference_forward(x, params)
    assert out.shape == (B, 1), out.shape
    assert jnp.allclose(out, ref, atol=1e-5, rtol=1e-5), (out, ref)

    print("KERNEL_OK")
</pallas_src>

<mosaic_0001>
module attributes {stable_mosaic.version = 11 : i64} {
  func.func @nnue_kernel(%arg0: i32, %arg1: memref<256x768xi8, #tpu.memory_space<vmem>>, %arg2: memref<768x16xf32, #tpu.memory_space<vmem>>, %arg3: memref<1x16xf32, #tpu.memory_space<vmem>>, %arg4: memref<16x16xf32, #tpu.memory_space<vmem>>, %arg5: memref<1x16xf32, #tpu.memory_space<vmem>>, %arg6: memref<1x16xf32, #tpu.memory_space<vmem>>, %arg7: memref<1x1xf32, #tpu.memory_space<vmem>>, %arg8: memref<256x1xf32, #tpu.memory_space<vmem>>) attributes {dimension_semantics = [#tpu.dimension_semantics<parallel>], iteration_bounds = array<i64: 1>, scalar_prefetch = 0 : i64, scratch_operands = 0 : i64, tpu.core_type = #tpu.core_type<tc>, window_params = [{transform_indices = @transform_0, window_bounds = array<i64: 256, 768>}, {pipeline_mode = #tpu.pipeline_mode<synchronous>, transform_indices = @transform_1, window_bounds = array<i64: 768, 16>}, {pipeline_mode = #tpu.pipeline_mode<synchronous>, transform_indices = @transform_2, window_bounds = array<i64: 1, 16>}, {pipeline_mode = #tpu.pipeline_mode<synchronous>, transform_indices = @transform_3, window_bounds = array<i64: 16, 16>}, {pipeline_mode = #tpu.pipeline_mode<synchronous>, transform_indices = @transform_4, window_bounds = array<i64: 1, 16>}, {pipeline_mode = #tpu.pipeline_mode<synchronous>, transform_indices = @transform_5, window_bounds = array<i64: 1, 16>}, {pipeline_mode = #tpu.pipeline_mode<synchronous>, transform_indices = @transform_6, window_bounds = array<i64: 1, 1>}, {transform_indices = @transform_7, window_bounds = array<i64: 256, 1>}]} {
    %c0 = arith.constant 0 : index
    %c0_0 = arith.constant 0 : index
    %0 = vector.load %arg1[%c0, %c0_0] : memref<256x768xi8, #tpu.memory_space<vmem>>, vector<256x768xi8>
    %1 = arith.sitofp %0 : vector<256x768xi8> to vector<256x768xf32>
    %c0_1 = arith.constant 0 : index
    %c0_2 = arith.constant 0 : index
    %2 = vector.load %arg2[%c0_1, %c0_2] : memref<768x16xf32, #tpu.memory_space<vmem>>, vector<768x16xf32>
    %cst = arith.constant dense<0.000000e+00> : vector<256x16xf32>
    %3 = tpu.matmul %1, %2, %cst {dimension_numbers = #tpu.dot_dimension_numbers<[1], [0], [0], [1], [0, 0, 1, 1], [], []>} : vector<256x768xf32>, vector<768x16xf32>, vector<256x16xf32> -> vector<256x16xf32>
    %c0_3 = arith.constant 0 : index
    %c0_4 = arith.constant 0 : index
    %4 = vector.load %arg3[%c0_3, %c0_4] : memref<1x16xf32, #tpu.memory_space<vmem>>, vector<1x16xf32>
    %5 = vector.broadcast %4 : vector<1x16xf32> to vector<256x16xf32>
    %6 = arith.addf %3, %5 : vector<256x16xf32>
    %cst_5 = arith.constant 0.000000e+00 : f32
    %cst_6 = arith.constant 1.000000e+00 : f32
    %7 = vector.broadcast %cst_5 : f32 to vector<256x16xf32>
    %8 = arith.maximumf %7, %6 : vector<256x16xf32>
    %9 = vector.broadcast %cst_6 : f32 to vector<256x16xf32>
    %10 = arith.minimumf %9, %8 : vector<256x16xf32>
    %c0_7 = arith.constant 0 : index
    %c0_8 = arith.constant 0 : index
    %11 = vector.load %arg4[%c0_7, %c0_8] : memref<16x16xf32, #tpu.memory_space<vmem>>, vector<16x16xf32>
    %cst_9 = arith.constant dense<0.000000e+00> : vector<256x16xf32>
    %12 = tpu.matmul %10, %11, %cst_9 {dimension_numbers = #tpu.dot_dimension_numbers<[1], [0], [0], [1], [0, 0, 1, 1], [], []>} : vector<256x16xf32>, vector<16x16xf32>, vector<256x16xf32> -> vector<256x16xf32>
    %c0_10 = arith.constant 0 : index
    %c0_11 = arith.constant 0 : index
    %13 = vector.load %arg5[%c0_10, %c0_11] : memref<1x16xf32, #tpu.memory_space<vmem>>, vector<1x16xf32>
    %14 = vector.broadcast %13 : vector<1x16xf32> to vector<256x16xf32>
    %15 = arith.addf %12, %14 : vector<256x16xf32>
    %cst_12 = arith.constant 0.000000e+00 : f32
    %cst_13 = arith.constant 1.000000e+00 : f32
    %16 = vector.broadcast %cst_12 : f32 to vector<256x16xf32>
    %17 = arith.maximumf %16, %15 : vector<256x16xf32>
    %18 = vector.broadcast %cst_13 : f32 to vector<256x16xf32>
    %19 = arith.minimumf %18, %17 : vector<256x16xf32>
    %c0_14 = arith.constant 0 : index
    %c0_15 = arith.constant 0 : index
    %20 = vector.load %arg6[%c0_14, %c0_15] : memref<1x16xf32, #tpu.memory_space<vmem>>, vector<1x16xf32>
    %21 = vector.broadcast %20 : vector<1x16xf32> to vector<256x16xf32>
    %22 = arith.mulf %19, %21 : vector<256x16xf32>
    %cst_16 = arith.constant dense<0.000000e+00> : vector<256xf32>
    %23 = vector.multi_reduction <add>, %22, %cst_16 [1] : vector<256x16xf32> to vector<256xf32>
    %24 = vector.shape_cast %23 : vector<256xf32> to vector<256x1xf32>
    %c0_17 = arith.constant 0 : index
    %c0_18 = arith.constant 0 : index
    %25 = vector.load %arg7[%c0_17, %c0_18] : memref<1x1xf32, #tpu.memory_space<vmem>>, vector<1x1xf32>
    %26 = vector.broadcast %25 : vector<1x1xf32> to vector<256x1xf32>
    %27 = arith.addf %24, %26 : vector<256x1xf32>
    %cst_19 = arith.constant 2.500000e-03 : f32
    %28 = vector.broadcast %cst_19 : f32 to vector<256x1xf32>
    %29 = arith.mulf %27, %28 : vector<256x1xf32>
    %cst_20 = arith.constant 0.000000e+00 : f32
    %30 = vector.broadcast %cst_20 : f32 to vector<256x1xf32>
    %31 = arith.subf %30, %29 : vector<256x1xf32>
    %32 = math.exp %31 : vector<256x1xf32>
    %cst_21 = arith.constant 1.000000e+00 : f32
    %33 = vector.broadcast %cst_21 : f32 to vector<256x1xf32>
    %34 = arith.addf %33, %32 : vector<256x1xf32>
    %cst_22 = arith.constant 1.000000e+00 : f32
    %35 = vector.broadcast %cst_22 : f32 to vector<256x1xf32>
    %36 = arith.divf %35, %34 : vector<256x1xf32>
    %c0_23 = arith.constant 0 : index
    %c0_24 = arith.constant 0 : index
    %37 = vector.load %arg8[%c0_23, %c0_24] : memref<256x1xf32, #tpu.memory_space<vmem>>, vector<256x1xf32>
    tpu.vector_store %arg8[%c0_23, %c0_24], %36 {strides = array<i32>} : memref<256x1xf32, #tpu.memory_space<vmem>>, vector<256x1xf32>,
    return
  }
  func.func @transform_0(%arg0: i32) -> (i32, i32) {
    %c0_i32 = arith.constant 0 : i32
    %c0_i32_0 = arith.constant 0 : i32
    return %arg0, %c0_i32 : i32, i32
  }
  func.func @transform_1(%arg0: i32) -> (i32, i32) {
    %c0_i32 = arith.constant 0 : i32
    %c0_i32_0 = arith.constant 0 : i32
    %c0_i32_1 = arith.constant 0 : i32
    return %c0_i32, %c0_i32_0 : i32, i32
  }
  func.func @transform_2(%arg0: i32) -> (i32, i32) {
    %c0_i32 = arith.constant 0 : i32
    %c0_i32_0 = arith.constant 0 : i32
    %c0_i32_1 = arith.constant 0 : i32
    return %c0_i32, %c0_i32_0 : i32, i32
  }
  func.func @transform_3(%arg0: i32) -> (i32, i32) {
    %c0_i32 = arith.constant 0 : i32
    %c0_i32_0 = arith.constant 0 : i32
    %c0_i32_1 = arith.constant 0 : i32
    return %c0_i32, %c0_i32_0 : i32, i32
  }
  func.func @transform_4(%arg0: i32) -> (i32, i32) {
    %c0_i32 = arith.constant 0 : i32
    %c0_i32_0 = arith.constant 0 : i32
    %c0_i32_1 = arith.constant 0 : i32
    return %c0_i32, %c0_i32_0 : i32, i32
  }
  func.func @transform_5(%arg0: i32) -> (i32, i32) {
    %c0_i32 = arith.constant 0 : i32
    %c0_i32_0 = arith.constant 0 : i32
    %c0_i32_1 = arith.constant 0 : i32
    return %c0_i32, %c0_i32_0 : i32, i32
  }
  func.func @transform_6(%arg0: i32) -> (i32, i32) {
    %c0_i32 = arith.constant 0 : i32
    %c0_i32_0 = arith.constant 0 : i32
    %c0_i32_1 = arith.constant 0 : i32
    return %c0_i32, %c0_i32_0 : i32, i32
  }
  func.func @transform_7(%arg0: i32) -> (i32, i32) {
    %c0_i32 = arith.constant 0 : i32
    %c0_i32_0 = arith.constant 0 : i32
    return %arg0, %c0_i32 : i32, i32
  }
}

</mosaic_0001>

<llo_original>
// kernel: tpu_custom_call.1
$region0: #{tpu_custom_call.1}
  #allocation0 [shape = 'u32[]', space=smem, size = 0x4, offset = 0x4, fixed_abs, tag = 'smem constant byte address 0x4 - core index']
  #allocation1 [shape = 'u32[144,128]{1,0:T(1,128)}', space=vmem, size = 0x12000, scoped, tag = 'internal scratch']
  #allocation2 [shape = 'f32[1,1]{1,0:T(1,128)S(1)}', space=vmem, size = 0x200, scoped, tag = 'scoped memory for tpu_custom_call.1']
  %s0 = inlined_call_operand.vmem [shape: s8[256,768], index: 0, kind: input, shape index: {}]
  %s1 = inlined_call_operand.vmem [shape: f32[768,16], index: 1, kind: input, shape index: {}]
  %s2 = inlined_call_operand.vmem [shape: f32[1,16], index: 2, kind: input, shape index: {}]
  %s3 = inlined_call_operand.vmem [shape: f32[16,16], index: 3, kind: input, shape index: {}]
  %s4 = inlined_call_operand.vmem [shape: f32[1,16], index: 4, kind: input, shape index: {}]
  %s5 = inlined_call_operand.vmem [shape: f32[1,16], index: 5, kind: input, shape index: {}]
  %s6 = inlined_call_operand.<no memory space> [shape: f32[1,1], index: 6, kind: input, shape index: {}]
  %s7 = inlined_call_operand.vmem [shape: f32[256,1], index: 7, kind: output, shape index: {}]
  %s8 = sld [smem:[#allocation0]]
  $region38: #{tpu_custom_call.1} parent=0
    _
  %s10 = ssub.s32 1, %s8
  %s11 = scalar_select 0, %s10, %s8
  %v12 = vstv %s6
  %13 = vst [vmem:[#allocation2] sm:$0x1] %v12
  // Predicated region
  $region2: #{tpu_custom_call.1} parent=0 // pred_check
    _
  $region3: #{tpu_custom_call.1} parent=0 // pred_check_branch
    %15 = sbr.rel (0) target = $region5
  $region4: #{tpu_custom_call.1} parent=0 // pred_region
    _
  $region5: #{tpu_custom_call.1} parent=0 // pred_fallthru
    _
  // Predicated region
  $region6: #{tpu_custom_call.1} parent=0 // pred_check
    _
  $region7: #{tpu_custom_call.1} parent=0 // pred_check_branch
    %17 = sbr.rel (0) target = $region9
  $region8: #{tpu_custom_call.1} parent=0 // pred_region
    _
  $region9: #{tpu_custom_call.1} parent=0 // pred_fallthru
    _
  // Predicated region
  $region10: #{tpu_custom_call.1} parent=0 // pred_check
    _
  $region11: #{tpu_custom_call.1} parent=0 // pred_check_branch
    %19 = sbr.rel (0) target = $region13
  $region12: #{tpu_custom_call.1} parent=0 // pred_region
    _
  $region13: #{tpu_custom_call.1} parent=0 // pred_fallthru
    _
  // Predicated region
  $region14: #{tpu_custom_call.1} parent=0 // pred_check
    _
  $region15: #{tpu_custom_call.1} parent=0 // pred_check_branch
    %21 = sbr.rel (0) target = $region17
  $region16: #{tpu_custom_call.1} parent=0 // pred_region
    _
  $region17: #{tpu_custom_call.1} parent=0 // pred_fallthru
    _
  // Predicated region
  $region18: #{tpu_custom_call.1} parent=0 // pred_check
    _
  $region19: #{tpu_custom_call.1} parent=0 // pred_check_branch
    %23 = sbr.rel (0) target = $region21
  $region20: #{tpu_custom_call.1} parent=0 // pred_region
    _
  $region21: #{tpu_custom_call.1} parent=0 // pred_fallthru
    _
  // Predicated region
  $region22: #{tpu_custom_call.1} parent=0 // pred_check
    _
  $region23: #{tpu_custom_call.1} parent=0 // pred_check_branch
    %25 = sbr.rel (0) target = $region25
  $region24: #{tpu_custom_call.1} parent=0 // pred_region
    _
  $region25: #{tpu_custom_call.1} parent=0 // pred_fallthru
    _
  // Predicated region
  $region26: #{tpu_custom_call.1} parent=0 // pred_check
    _
  $region27: #{tpu_custom_call.1} parent=0 // pred_check_branch
    %27 = sbr.rel (0) target = $region29
  $region28: #{tpu_custom_call.1} parent=0 // pred_region
    _
  $region29: #{tpu_custom_call.1} parent=0 // pred_fallthru
    _
  %v28 = vld [vmem:[%s0] sm:$0xff]
  %v29 = vld [vmem:[%s0 + $0x8] sm:$0xff]
  %v30 = vld [vmem:[%s0 + $0x10] sm:$0xff]
  %v31 = vld [vmem:[%s0 + $0x18] sm:$0xff]
  %v32 = vld [vmem:[%s0 + $0x20] sm:$0xff]
  %v33 = vld [vmem:[%s0 + $0x28] sm:$0xff]
  %v34 = vld [vmem:[%s0 + $0x30] sm:$0xff]
  %v35 = vld [vmem:[%s0 + $0x38] sm:$0xff]
  %v36 = vld [vmem:[%s0 + $0x40] sm:$0xff]
  %v37 = vld [vmem:[%s0 + $0x48] sm:$0xff]
  %v38 = vld [vmem:[%s0 + $0x50] sm:$0xff]
  %v39 = vld [vmem:[%s0 + $0x58] sm:$0xff]
  %v40 = vld [vmem:[%s0 + $0x60] sm:$0xff]
  %v41 = vld [vmem:[%s0 + $0x68] sm:$0xff]
  %v42 = vld [vmem:[%s0 + $0x70] sm:$0xff]
  %v43 = vld [vmem:[%s0 + $0x78] sm:$0xff]
  %v44 = vld [vmem:[%s0 + $0x80] sm:$0xff]
  %v45 = vld [vmem:[%s0 + $0x88] sm:$0xff]
  %v46 = vld [vmem:[%s0 + $0x90] sm:$0xff]
  %v47 = vld [vmem:[%s0 + $0x98] sm:$0xff]
  %v48 = vld [vmem:[%s0 + $0xa0] sm:$0xff]
  %v49 = vld [vmem:[%s0 + $0xa8] sm:$0xff]
  %v50 = vld [vmem:[%s0 + $0xb0] sm:$0xff]
  %v51 = vld [vmem:[%s0 + $0xb8] sm:$0xff]
  %v52 = vld [vmem:[%s0 + $0xc0] sm:$0xff]
  %v53 = vld [vmem:[%s0 + $0xc8] sm:$0xff]
  %v54 = vld [vmem:[%s0 + $0xd0] sm:$0xff]
  %v55 = vld [vmem:[%s0 + $0xd8] sm:$0xff]
  %v56 = vld [vmem:[%s0 + $0xe0] sm:$0xff]
  %v57 = vld [vmem:[%s0 + $0xe8] sm:$0xff]
  %v58 = vld [vmem:[%s0 + $0xf0] sm:$0xff]
  %v59 = vld [vmem:[%s0 + $0xf8] sm:$0xff]
  %v60 = vld [vmem:[%s0 + $0x100] sm:$0xff]
  %v61 = vld [vmem:[%s0 + $0x108] sm:$0xff]
  %v62 = vld [vmem:[%s0 + $0x110] sm:$0xff]
  %v63 = vld [vmem:[%s0 + $0x118] sm:$0xff]
  %v64 = vld [vmem:[%s0 + $0x120] sm:$0xff]
  %v65 = vld [vmem:[%s0 + $0x128] sm:$0xff]
  %v66 = vld [vmem:[%s0 + $0x130] sm:$0xff]
  %v67 = vld [vmem:[%s0 + $0x138] sm:$0xff]
  %v68 = vld [vmem:[%s0 + $0x140] sm:$0xff]
  %v69 = vld [vmem:[%s0 + $0x148] sm:$0xff]
  %v70 = vld [vmem:[%s0 + $0x150] sm:$0xff]
  %v71 = vld [vmem:[%s0 + $0x158] sm:$0xff]
  %v72 = vld [vmem:[%s0 + $0x160] sm:$0xff]
  %v73 = vld [vmem:[%s0 + $0x168] sm:$0xff]
  %v74 = vld [vmem:[%s0 + $0x170] sm:$0xff]
  %v75 = vld [vmem:[%s0 + $0x178] sm:$0xff]
  %v76 = vunpack.c.0.s8 %v28
  %v77 = vunpack.c.0.s8 %v29
  %v78 = vunpack.c.0.s8 %v30
  %v79 = vunpack.c.0.s8 %v31
  %v80 = vunpack.c.0.s8 %v32
  %v81 = vunpack.c.0.s8 %v33
  %v82 = vunpack.c.1.s8 %v28
  %v83 = vunpack.c.1.s8 %v29
  %v84 = vunpack.c.1.s8 %v30
  %v85 = vunpack.c.1.s8 %v31
  %v86 = vunpack.c.1.s8 %v32
  %v87 = vunpack.c.1.s8 %v33
  %v88 = vunpack.c.2.s8 %v28
  %v89 = vunpack.c.2.s8 %v29
  %v90 = vunpack.c.2.s8 %v30
  %v91 = vunpack.c.2.s8 %v31
  %v92 = vunpack.c.2.s8 %v32
  %v93 = vunpack.c.2.s8 %v33
  %v94 = vunpack.c.3.s8 %v28
  %v95 = vunpack.c.3.s8 %v29
  %v96 = vunpack.c.3.s8 %v30
  %v97 = vunpack.c.3.s8 %v31
  %v98 = vunpack.c.3.s8 %v32
  %v99 = vunpack.c.3.s8 %v33
  %v100 = vunpack.c.0.s8 %v34
  %v101 = vunpack.c.0.s8 %v35
  %v102 = vunpack.c.0.s8 %v36
  %v103 = vunpack.c.0.s8 %v37
  %v104 = vunpack.c.0.s8 %v38
  %v105 = vunpack.c.0.s8 %v39
  %v106 = vunpack.c.1.s8 %v34
  %v107 = vunpack.c.1.s8 %v35
  %v108 = vunpack.c.1.s8 %v36
  %v109 = vunpack.c.1.s8 %v37
  %v110 = vunpack.c.1.s8 %v38
  %v111 = vunpack.c.1.s8 %v39
  %v112 = vunpack.c.2.s8 %v34
  %v113 = vunpack.c.2.s8 %v35
  %v114 = vunpack.c.2.s8 %v36
  %v115 = vunpack.c.2.s8 %v37
  %v116 = vunpack.c.2.s8 %v38
  %v117 = vunpack.c.2.s8 %v39
  %v118 = vunpack.c.3.s8 %v34
  %v119 = vunpack.c.3.s8 %v35
  %v120 = vunpack.c.3.s8 %v36
  %v121 = vunpack.c.3.s8 %v37
  %v122 = vunpack.c.3.s8 %v38
  %v123 = vunpack.c.3.s8 %v39
  %v124 = vunpack.c.0.s8 %v40
  %v125 = vunpack.c.0.s8 %v41
  %v126 = vunpack.c.0.s8 %v42
  %v127 = vunpack.c.0.s8 %v43
  %v128 = vunpack.c.0.s8 %v44
  %v129 = vunpack.c.0.s8 %v45
  %v130 = vunpack.c.1.s8 %v40
  %v131 = vunpack.c.1.s8 %v41
  %v132 = vunpack.c.1.s8 %v42
  %v133 = vunpack.c.1.s8 %v43
  %v134 = vunpack.c.1.s8 %v44
  %v135 = vunpack.c.1.s8 %v45
  %v136 = vunpack.c.2.s8 %v40
  %v137 = vunpack.c.2.s8 %v41
  %v138 = vunpack.c.2.s8 %v42
  %v139 = vunpack.c.2.s8 %v43
  %v140 = vunpack.c.2.s8 %v44
  %v141 = vunpack.c.2.s8 %v45
  %v142 = vunpack.c.3.s8 %v40
  %v143 = vunpack.c.3.s8 %v41
  %v144 = vunpack.c.3.s8 %v42
  %v145 = vunpack.c.3.s8 %v43
  %v146 = vunpack.c.3.s8 %v44
  %v147 = vunpack.c.3.s8 %v45
  %v148 = vunpack.c.0.s8 %v46
  %v149 = vunpack.c.0.s8 %v47
  %v150 = vunpack.c.0.s8 %v48
  %v151 = vunpack.c.0.s8 %v49
  %v152 = vunpack.c.0.s8 %v50
  %v153 = vunpack.c.0.s8 %v51
  %v154 = vunpack.c.1.s8 %v46
  %v155 = vunpack.c.1.s8 %v47
  %v156 = vunpack.c.1.s8 %v48
  %v157 = vunpack.c.1.s8 %v49
  %v158 = vunpack.c.1.s8 %v50
  %v159 = vunpack.c.1.s8 %v51
  %v160 = vunpack.c.2.s8 %v46
  %v161 = vunpack.c.2.s8 %v47
  %v162 = vunpack.c.2.s8 %v48
  %v163 = vunpack.c.2.s8 %v49
  %v164 = vunpack.c.2.s8 %v50
  %v165 = vunpack.c.2.s8 %v51
  %v166 = vunpack.c.3.s8 %v46
  %v167 = vunpack.c.3.s8 %v47
  %v168 = vunpack.c.3.s8 %v48
  %v169 = vunpack.c.3.s8 %v49
  %v170 = vunpack.c.3.s8 %v50
  %v171 = vunpack.c.3.s8 %v51
  %v172 = vunpack.c.0.s8 %v52
  %v173 = vunpack.c.0.s8 %v53
  %v174 = vunpack.c.0.s8 %v54
  %v175 = vunpack.c.0.s8 %v55
  %v176 = vunpack.c.0.s8 %v56
  %v177 = vunpack.c.0.s8 %v57
  %v178 = vunpack.c.1.s8 %v52
  %v179 = vunpack.c.1.s8 %v53
  %v180 = vunpack.c.1.s8 %v54
  %v181 = vunpack.c.1.s8 %v55
  %v182 = vunpack.c.1.s8 %v56
  %v183 = vunpack.c.1.s8 %v57
  %v184 = vunpack.c.2.s8 %v52
  %v185 = vunpack.c.2.s8 %v53
  %v186 = vunpack.c.2.s8 %v54
  %v187 = vunpack.c.2.s8 %v55
  %v188 = vunpack.c.2.s8 %v56
  %v189 = vunpack.c.2.s8 %v57
  %v190 = vunpack.c.3.s8 %v52
  %v191 = vunpack.c.3.s8 %v53
  %v192 = vunpack.c.3.s8 %v54
  %v193 = vunpack.c.3.s8 %v55
  %v194 = vunpack.c.3.s8 %v56
  %v195 = vunpack.c.3.s8 %v57
  %v196 = vunpack.c.0.s8 %v58
  %v197 = vunpack.c.0.s8 %v59
  %v198 = vunpack.c.0.s8 %v60
  %v199 = vunpack.c.0.s8 %v61
  %v200 = vunpack.c.0.s8 %v62
  %v201 = vunpack.c.0.s8 %v63
  %v202 = vunpack.c.1.s8 %v58
  %v203 = vunpack.c.1.s8 %v59
  %v204 = vunpack.c.1.s8 %v60
  %v205 = vunpack.c.1.s8 %v61
  %v206 = vunpack.c.1.s8 %v62
  %v207 = vunpack.c.1.s8 %v63
  %v208 = vunpack.c.2.s8 %v58
  %v209 = vunpack.c.2.s8 %v59
  %v210 = vunpack.c.2.s8 %v60
  %v211 = vunpack.c.2.s8 %v61
  %v212 = vunpack.c.2.s8 %v62
  %v213 = vunpack.c.2.s8 %v63
  %v214 = vunpack.c.3.s8 %v58
  %v215 = vunpack.c.3.s8 %v59
  %v216 = vunpack.c.3.s8 %v60
  %v217 = vunpack.c.3.s8 %v61
  %v218 = vunpack.c.3.s8 %v62
  %v219 = vunpack.c.3.s8 %v63
  %v220 = vunpack.c.0.s8 %v64
  %v221 = vunpack.c.0.s8 %v65
  %v222 = vunpack.c.0.s8 %v66
  %v223 = vunpack.c.0.s8 %v67
  %v224 = vunpack.c.0.s8 %v68
  %v225 = vunpack.c.0.s8 %v69
  %v226 = vunpack.c.1.s8 %v64
  %v227 = vunpack.c.1.s8 %v65
  %v228 = vunpack.c.1.s8 %v66
  %v229 = vunpack.c.1.s8 %v67
  %v230 = vunpack.c.1.s8 %v68
  %v231 = vunpack.c.1.s8 %v69
  %v232 = vunpack.c.2.s8 %v64
  %v233 = vunpack.c.2.s8 %v65
  %v234 = vunpack.c.2.s8 %v66
  %v235 = vunpack.c.2.s8 %v67
  %v236 = vunpack.c.2.s8 %v68
  %v237 = vunpack.c.2.s8 %v69
  %v238 = vunpack.c.3.s8 %v64
  %v239 = vunpack.c.3.s8 %v65
  %v240 = vunpack.c.3.s8 %v66
  %v241 = vunpack.c.3.s8 %v67
  %v242 = vunpack.c.3.s8 %v68
  %v243 = vunpack.c.3.s8 %v69
  %v244 = vunpack.c.0.s8 %v70
  %v245 = vunpack.c.0.s8 %v71
  %v246 = vunpack.c.0.s8 %v72
  %v247 = vunpack.c.0.s8 %v73
  %v248 = vunpack.c.0.s8 %v74
  %v249 = vunpack.c.0.s8 %v75
  %v250 = vunpack.c.1.s8 %v70
  %v251 = vunpack.c.1.s8 %v71
  %v252 = vunpack.c.1.s8 %v72
  %v253 = vunpack.c.1.s8 %v73
  %v254 = vunpack.c.1.s8 %v74
  %v255 = vunpack.c.1.s8 %v75
  %v256 = vunpack.c.2.s8 %v70
  %v257 = vunpack.c.2.s8 %v71
  %v258 = vunpack.c.2.s8 %v72
  %v259 = vunpack.c.2.s8 %v73
  %v260 = vunpack.c.2.s8 %v74
  %v261 = vunpack.c.2.s8 %v75
  %v262 = vunpack.c.3.s8 %v70
  %v263 = vunpack.c.3.s8 %v71
  %v264 = vunpack.c.3.s8 %v72
  %v265 = vunpack.c.3.s8 %v73
  %v266 = vunpack.c.3.s8 %v74
  %v267 = vunpack.c.3.s8 %v75
  %v268 = vcvt.s32.f32 %v76
  %v269 = vcvt.s32.f32 %v77
  %v270 = vcvt.s32.f32 %v78
  %v271 = vcvt.s32.f32 %v79
  %v272 = vcvt.s32.f32 %v80
  %v273 = vcvt.s32.f32 %v81
  %v274 = vcvt.s32.f32 %v82
  %v275 = vcvt.s32.f32 %v83
  %v276 = vcvt.s32.f32 %v84
  %v277 = vcvt.s32.f32 %v85
  %v278 = vcvt.s32.f32 %v86
  %v279 = vcvt.s32.f32 %v87
  %v280 = vcvt.s32.f32 %v88
  %v281 = vcvt.s32.f32 %v89
  %v282 = vcvt.s32.f32 %v90
  %v283 = vcvt.s32.f32 %v91
  %v284 = vcvt.s32.f32 %v92
  %v285 = vcvt.s32.f32 %v93
  %v286 = vcvt.s32.f32 %v94
  %v287 = vcvt.s32.f32 %v95
  %v288 = vcvt.s32.f32 %v96
  %v289 = vcvt.s32.f32 %v97
  %v290 = vcvt.s32.f32 %v98
  %v291 = vcvt.s32.f32 %v99
  %v292 = vcvt.s32.f32 %v100
  %v293 = vcvt.s32.f32 %v101
  %v294 = vcvt.s32.f32 %v102
  %v295 = vcvt.s32.f32 %v103
  %v296 = vcvt.s32.f32 %v104
  %v297 = vcvt.s32.f32 %v105
  %v298 = vcvt.s32.f32 %v106
  %v299 = vcvt.s32.f32 %v107
  %v300 = vcvt.s32.f32 %v108
  %v301 = vcvt.s32.f32 %v109
  %v302 = vcvt.s32.f32 %v110
  %v303 = vcvt.s32.f32 %v111
  %v304 = vcvt.s32.f32 %v112
  %v305 = vcvt.s32.f32 %v113
  %v306 = vcvt.s32.f32 %v114
  %v307 = vcvt.s32.f32 %v115
  %v308 = vcvt.s32.f32 %v116
  %v309 = vcvt.s32.f32 %v117
  %v310 = vcvt.s32.f32 %v118
  %v311 = vcvt.s32.f32 %v119
  %v312 = vcvt.s32.f32 %v120
  %v313 = vcvt.s32.f32 %v121
  %v314 = vcvt.s32.f32 %v122
  %v315 = vcvt.s32.f32 %v123
  %v316 = vcvt.s32.f32 %v124
  %v317 = vcvt.s32.f32 %v125
  %v318 = vcvt.s32.f32 %v126
  %v319 = vcvt.s32.f32 %v127
  %v320 = vcvt.s32.f32 %v128
  %v321 = vcvt.s32.f32 %v129
  %v322 = vcvt.s32.f32 %v130
  %v323 = vcvt.s32.f32 %v131
  %v324 = vcvt.s32.f32 %v132
  %v325 = vcvt.s32.f32 %v133
  %v326 = vcvt.s32.f32 %v134
  %v327 = vcvt.s32.f32 %v135
  %v328 = vcvt.s32.f32 %v136
  %v329 = vcvt.s32.f32 %v137
  %v330 = vcvt.s32.f32 %v138
  %v331 = vcvt.s32.f32 %v139
  %v332 = vcvt.s32.f32 %v140
  %v333 = vcvt.s32.f32 %v141
  %v334 = vcvt.s32.f32 %v142
  %v335 = vcvt.s32.f32 %v143
  %v336 = vcvt.s32.f32 %v144
  %v337 = vcvt.s32.f32 %v145
  %v338 = vcvt.s32.f32 %v146
  %v339 = vcvt.s32.f32 %v147
  %v340 = vcvt.s32.f32 %v148
  %v341 = vcvt.s32.f32 %v149
  %v342 = vcvt.s32.f32 %v150
  %v343 = vcvt.s32.f32 %v151
  %v344 = vcvt.s32.f32 %v152
  %v345 = vcvt.s32.f32 %v153
  %v346 = vcvt.s32.f32 %v154
  %v347 = vcvt.s32.f32 %v155
  %v348 = vcvt.s32.f32 %v156
  %v349 = vcvt.s32.f32 %v157
  %v350 = vcvt.s32.f32 %v158
  %v351 = vcvt.s32.f32 %v159
  %v352 = vcvt.s32.f32 %v160
  %v353 = vcvt.s32.f32 %v161
  %v354 = vcvt.s32.f32 %v162
  %v355 = vcvt.s32.f32 %v163
  %v356 = vcvt.s32.f32 %v164
  %v357 = vcvt.s32.f32 %v165
  %v358 = vcvt.s32.f32 %v166
  %v359 = vcvt.s32.f32 %v167
  %v360 = vcvt.s32.f32 %v168
  %v361 = vcvt.s32.f32 %v169
  %v362 = vcvt.s32.f32 %v170
  %v363 = vcvt.s32.f32 %v171
  %v364 = vcvt.s32.f32 %v172
  %v365 = vcvt.s32.f32 %v173
  %v366 = vcvt.s32.f32 %v174
  %v367 = vcvt.s32.f32 %v175
  %v368 = vcvt.s32.f32 %v176
  %v369 = vcvt.s32.f32 %v177
  %v370 = vcvt.s32.f32 %v178
  %v371 = vcvt.s32.f32 %v179
  %v372 = vcvt.s32.f32 %v180
  %v373 = vcvt.s32.f32 %v181
  %v374 = vcvt.s32.f32 %v182
  %v375 = vcvt.s32.f32 %v183
  %v376 = vcvt.s32.f32 %v184
  %v377 = vcvt.s32.f32 %v185
  %v378 = vcvt.s32.f32 %v186
  %v379 = vcvt.s32.f32 %v187
  %v380 = vcvt.s32.f32 %v188
  %v381 = vcvt.s32.f32 %v189
  %v382 = vcvt.s32.f32 %v190
  %v383 = vcvt.s32.f32 %v191
  %v384 = vcvt.s32.f32 %v192
  %v385 = vcvt.s32.f32 %v193
  %v386 = vcvt.s32.f32 %v194
  %v387 = vcvt.s32.f32 %v195
  %v388 = vcvt.s32.f32 %v196
  %v389 = vcvt.s32.f32 %v197
  %v390 = vcvt.s32.f32 %v198
  %v391 = vcvt.s32.f32 %v199
  %v392 = vcvt.s32.f32 %v200
  %v393 = vcvt.s32.f32 %v201
  %v394 = vcvt.s32.f32 %v202
  %v395 = vcvt.s32.f32 %v203
  %v396 = vcvt.s32.f32 %v204
  %v397 = vcvt.s32.f32 %v205
  %v398 = vcvt.s32.f32 %v206
  %v399 = vcvt.s32.f32 %v207
  %v400 = vcvt.s32.f32 %v208
  %v401 = vcvt.s32.f32 %v209
  %v402 = vcvt.s32.f32 %v210
  %v403 = vcvt.s32.f32 %v211
  %v404 = vcvt.s32.f32 %v212
  %v405 = vcvt.s32.f32 %v213
  %v406 = vcvt.s32.f32 %v214
  %v407 = vcvt.s32.f32 %v215
  %v408 = vcvt.s32.f32 %v216
  %v409 = vcvt.s32.f32 %v217
  %v410 = vcvt.s32.f32 %v218
  %v411 = vcvt.s32.f32 %v219
  %v412 = vcvt.s32.f32 %v220
  %v413 = vcvt.s32.f32 %v221
  %v414 = vcvt.s32.f32 %v222
  %v415 = vcvt.s32.f32 %v223
  %v416 = vcvt.s32.f32 %v224
  %v417 = vcvt.s32.f32 %v225
  %v418 = vcvt.s32.f32 %v226
  %v419 = vcvt.s32.f32 %v227
  %v420 = vcvt.s32.f32 %v228
  %v421 = vcvt.s32.f32 %v229
  %v422 = vcvt.s32.f32 %v230
  %v423 = vcvt.s32.f32 %v231
  %v424 = vcvt.s32.f32 %v232
  %v425 = vcvt.s32.f32 %v233
  %v426 = vcvt.s32.f32 %v234
  %v427 = vcvt.s32.f32 %v235
  %v428 = vcvt.s32.f32 %v236
  %v429 = vcvt.s32.f32 %v237
  %v430 = vcvt.s32.f32 %v238
  %v431 = vcvt.s32.f32 %v239
  %v432 = vcvt.s32.f32 %v240
  %v433 = vcvt.s32.f32 %v241
  %v434 = vcvt.s32.f32 %v242
  %v435 = vcvt.s32.f32 %v243
  %v436 = vcvt.s32.f32 %v244
  %v437 = vcvt.s32.f32 %v245
  %v438 = vcvt.s32.f32 %v246
  %v439 = vcvt.s32.f32 %v247
  %v440 = vcvt.s32.f32 %v248
  %v441 = vcvt.s32.f32 %v249
  %v442 = vcvt.s32.f32 %v250
  %v443 = vcvt.s32.f32 %v251
  %v444 = vcvt.s32.f32 %v252
  %v445 = vcvt.s32.f32 %v253
  %v446 = vcvt.s32.f32 %v254
  %v447 = vcvt.s32.f32 %v255
  %v448 = vcvt.s32.f32 %v256
  %v449 = vcvt.s32.f32 %v257
  %v450 = vcvt.s32.f32 %v258
  %v451 = vcvt.s32.f32 %v259
  %v452 = vcvt.s32.f32 %v260
  %v453 = vcvt.s32.f32 %v261
  %v454 = vcvt.s32.f32 %v262
  %v455 = vcvt.s32.f32 %v263
  %v456 = vcvt.s32.f32 %v264
  %v457 = vcvt.s32.f32 %v265
  %v458 = vcvt.s32.f32 %v266
  %v459 = vcvt.s32.f32 %v267
  %v460 = vld [vmem:[%s1] sm:$0xff]
  %v461 = vld [vmem:[%s1 + $0x8] sm:$0xff]
  %v462 = vld [vmem:[%s1 + $0x10] sm:$0xff]
  %v463 = vld [vmem:[%s1 + $0x18] sm:$0xff]
  %v464 = vld [vmem:[%s1 + $0x20] sm:$0xff]
  %v465 = vld [vmem:[%s1 + $0x28] sm:$0xff]
  %v466 = vld [vmem:[%s1 + $0x30] sm:$0xff]
  %v467 = vld [vmem:[%s1 + $0x38] sm:$0xff]
  %v468 = vld [vmem:[%s1 + $0x40] sm:$0xff]
  %v469 = vld [vmem:[%s1 + $0x48] sm:$0xff]
  %v470 = vld [vmem:[%s1 + $0x50] sm:$0xff]
  %v471 = vld [vmem:[%s1 + $0x58] sm:$0xff]
  %v472 = vld [vmem:[%s1 + $0x60] sm:$0xff]
  %v473 = vld [vmem:[%s1 + $0x68] sm:$0xff]
  %v474 = vld [vmem:[%s1 + $0x70] sm:$0xff]
  %v475 = vld [vmem:[%s1 + $0x78] sm:$0xff]
  %v476 = vld [vmem:[%s1 + $0x80] sm:$0xff]
  %v477 = vld [vmem:[%s1 + $0x88] sm:$0xff]
  %v478 = vld [vmem:[%s1 + $0x90] sm:$0xff]
  %v479 = vld [vmem:[%s1 + $0x98] sm:$0xff]
  %v480 = vld [vmem:[%s1 + $0xa0] sm:$0xff]
  %v481 = vld [vmem:[%s1 + $0xa8] sm:$0xff]
  %v482 = vld [vmem:[%s1 + $0xb0] sm:$0xff]
  %v483 = vld [vmem:[%s1 + $0xb8] sm:$0xff]
  %v484 = vld [vmem:[%s1 + $0xc0] sm:$0xff]
  %v485 = vld [vmem:[%s1 + $0xc8] sm:$0xff]
  %v486 = vld [vmem:[%s1 + $0xd0] sm:$0xff]
  %v487 = vld [vmem:[%s1 + $0xd8] sm:$0xff]
  %v488 = vld [vmem:[%s1 + $0xe0] sm:$0xff]
  %v489 = vld [vmem:[%s1 + $0xe8] sm:$0xff]
  %v490 = vld [vmem:[%s1 + $0xf0] sm:$0xff]
  %v491 = vld [vmem:[%s1 + $0xf8] sm:$0xff]
  %v492 = vld [vmem:[%s1 + $0x100] sm:$0xff]
  %v493 = vld [vmem:[%s1 + $0x108] sm:$0xff]
  %v494 = vld [vmem:[%s1 + $0x110] sm:$0xff]
  %v495 = vld [vmem:[%s1 + $0x118] sm:$0xff]
  %v496 = vld [vmem:[%s1 + $0x120] sm:$0xff]
  %v497 = vld [vmem:[%s1 + $0x128] sm:$0xff]
  %v498 = vld [vmem:[%s1 + $0x130] sm:$0xff]
  %v499 = vld [vmem:[%s1 + $0x138] sm:$0xff]
  %v500 = vld [vmem:[%s1 + $0x140] sm:$0xff]
  %v501 = vld [vmem:[%s1 + $0x148] sm:$0xff]
  %v502 = vld [vmem:[%s1 + $0x150] sm:$0xff]
  %v503 = vld [vmem:[%s1 + $0x158] sm:$0xff]
  %v504 = vld [vmem:[%s1 + $0x160] sm:$0xff]
  %v505 = vld [vmem:[%s1 + $0x168] sm:$0xff]
  %v506 = vld [vmem:[%s1 + $0x170] sm:$0xff]
  %v507 = vld [vmem:[%s1 + $0x178] sm:$0xff]
  %v508 = vld [vmem:[%s1 + $0x180] sm:$0xff]
  %v509 = vld [vmem:[%s1 + $0x188] sm:$0xff]
  %v510 = vld [vmem:[%s1 + $0x190] sm:$0xff]
  %v511 = vld [vmem:[%s1 + $0x198] sm:$0xff]
  %v512 = vld [vmem:[%s1 + $0x1a0] sm:$0xff]
  %v513 = vld [vmem:[%s1 + $0x1a8] sm:$0xff]
  %v514 = vld [vmem:[%s1 + $0x1b0] sm:$0xff]
  %v515 = vld [vmem:[%s1 + $0x1b8] sm:$0xff]
  %v516 = vld [vmem:[%s1 + $0x1c0] sm:$0xff]
  %v517 = vld [vmem:[%s1 + $0x1c8] sm:$0xff]
  %v518 = vld [vmem:[%s1 + $0x1d0] sm:$0xff]
  %v519 = vld [vmem:[%s1 + $0x1d8] sm:$0xff]
  %v520 = vld [vmem:[%s1 + $0x1e0] sm:$0xff]
  %v521 = vld [vmem:[%s1 + $0x1e8] sm:$0xff]
  %v522 = vld [vmem:[%s1 + $0x1f0] sm:$0xff]
  %v523 = vld [vmem:[%s1 + $0x1f8] sm:$0xff]
  %v524 = vld [vmem:[%s1 + $0x200] sm:$0xff]
  %v525 = vld [vmem:[%s1 + $0x208] sm:$0xff]
  %v526 = vld [vmem:[%s1 + $0x210] sm:$0xff]
  %v527 = vld [vmem:[%s1 + $0x218] sm:$0xff]
  %v528 = vld [vmem:[%s1 + $0x220] sm:$0xff]
  %v529 = vld [vmem:[%s1 + $0x228] sm:$0xff]
  %v530 = vld [vmem:[%s1 + $0x230] sm:$0xff]
  %v531 = vld [vmem:[%s1 + $0x238] sm:$0xff]
  %v532 = vld [vmem:[%s1 + $0x240] sm:$0xff]
  %v533 = vld [vmem:[%s1 + $0x248] sm:$0xff]
  %v534 = vld [vmem:[%s1 + $0x250] sm:$0xff]
  %v535 = vld [vmem:[%s1 + $0x258] sm:$0xff]
  %v536 = vld [vmem:[%s1 + $0x260] sm:$0xff]
  %v537 = vld [vmem:[%s1 + $0x268] sm:$0xff]
  %v538 = vld [vmem:[%s1 + $0x270] sm:$0xff]
  %v539 = vld [vmem:[%s1 + $0x278] sm:$0xff]
  %v540 = vld [vmem:[%s1 + $0x280] sm:$0xff]
  %v541 = vld [vmem:[%s1 + $0x288] sm:$0xff]
  %v542 = vld [vmem:[%s1 + $0x290] sm:$0xff]
  %v543 = vld [vmem:[%s1 + $0x298] sm:$0xff]
  %v544 = vld [vmem:[%s1 + $0x2a0] sm:$0xff]
  %v545 = vld [vmem:[%s1 + $0x2a8] sm:$0xff]
  %v546 = vld [vmem:[%s1 + $0x2b0] sm:$0xff]
  %v547 = vld [vmem:[%s1 + $0x2b8] sm:$0xff]
  %v548 = vld [vmem:[%s1 + $0x2c0] sm:$0xff]
  %v549 = vld [vmem:[%s1 + $0x2c8] sm:$0xff]
  %v550 = vld [vmem:[%s1 + $0x2d0] sm:$0xff]
  %v551 = vld [vmem:[%s1 + $0x2d8] sm:$0xff]
  %v552 = vld [vmem:[%s1 + $0x2e0] sm:$0xff]
  %v553 = vld [vmem:[%s1 + $0x2e8] sm:$0xff]
  %v554 = vld [vmem:[%s1 + $0x2f0] sm:$0xff]
  %v555 = vld [vmem:[%s1 + $0x2f8] sm:$0xff]
  %v556 = vld [vmem:[%s2] sm:$0x1]
  %v558 = vlaneseq
  %v559 = vshrl.u32 %v558, 7
  %v560 = vsub.s32 0, %v559
  %v561 = vrot.slane %v556, %v560
  %563 = vmatprep.subr.mxu0 0.0
  %564 = vmatpush1.msra.mxu0 %v460
  %565 = vmatprep.subr.mxu0 0.0
  %566 = vmatpush1.msra.mxu0 %v461
  %567 = vmatprep.subr.mxu0 0.0
  %568 = vmatpush1.msra.mxu0 %v462
  %569 = vmatprep.subr.mxu0 0.0
  %570 = vmatpush1.msra.mxu0 %v463
  %571 = vmatprep.subr.mxu0 0.0
  %572 = vmatpush1.msra.mxu0 %v464
  %573 = vmatprep.subr.mxu0 0.0
  %574 = vmatpush1.msra.mxu0 %v465
  %575 = vmatprep.subr.mxu0 0.0
  %576 = vmatpush1.msra.mxu0 %v466
  %577 = vmatprep.subr.mxu0 0.0
  %578 = vmatpush1.msra.mxu0 %v467
  %579 = vmatprep.subr.mxu0 0.0
  %580 = vmatpush1.msra.mxu0 %v468
  %581 = vmatprep.subr.mxu0 0.0
  %582 = vmatpush1.msra.mxu0 %v469
  %583 = vmatprep.subr.mxu0 0.0
  %584 = vmatpush1.msra.mxu0 %v470
  %585 = vmatprep.subr.mxu0 0.0
  %586 = vmatpush1.msra.mxu0 %v471
  %587 = vmatprep.subr.mxu0 0.0
  %588 = vmatpush1.msra.mxu0 %v472
  %589 = vmatprep.subr.mxu0 0.0
  %590 = vmatpush1.msra.mxu0 %v473
  %591 = vmatprep.subr.mxu0 0.0
  %592 = vmatpush1.msra.mxu0 %v474
  %593 = vmatprep.subr.mxu0 0.0
  %594 = vmatpush1.msra.mxu0 %v475
  %595 = vmatprep.subr.mxu0 0.0
  %596 = vmatpush1.msra.mxu0 %v476
  %597 = vmatprep.subr.mxu0 0.0
  %598 = vmatpush1.msra.mxu0 %v477
  %599 = vmatprep.subr.mxu0 0.0
  %600 = vmatpush1.msra.mxu0 %v478
  %601 = vmatprep.subr.mxu0 0.0
  %602 = vmatpush1.msra.mxu0 %v479
  %603 = vmatprep.subr.mxu0 0.0
  %604 = vmatpush1.msra.mxu0 %v480
  %605 = vmatprep.subr.mxu0 0.0
  %606 = vmatpush1.msra.mxu0 %v481
  %607 = vmatprep.subr.mxu0 0.0
  %608 = vmatpush1.msra.mxu0 %v482
  %609 = vmatprep.subr.mxu0 0.0
  %610 = vmatpush1.msra.mxu0 %v483
  %611 = vmatprep.subr.mxu0 0.0
  %612 = vmatpush1.msra.mxu0 %v484
  %613 = vmatprep.subr.mxu0 0.0
  %614 = vmatpush1.msra.mxu0 %v485
  %615 = vmatprep.subr.mxu0 0.0
  %616 = vmatpush1.msra.mxu0 %v486
  %617 = vmatprep.subr.mxu0 0.0
  %618 = vmatpush1.msra.mxu0 %v487
  %619 = vmatprep.subr.mxu0 0.0
  %620 = vmatpush1.msra.mxu0 %v488
  %621 = vmatprep.subr.mxu0 0.0
  %622 = vmatpush1.msra.mxu0 %v489
  %623 = vmatprep.subr.mxu0 0.0
  %624 = vmatpush1.msra.mxu0 %v490
  %625 = vmatprep.subr.mxu0 0.0
  %626 = vmatpush1.msra.mxu0 %v491
  %627 = vmatprep.mubr.f32.mxu0 %v269
  %628 = vmatmul.mubr.f32.gmra.mrb[0].mxu0 %v268
  %v629 = vpop.f32.mrb[0].mxu0
  %v630 = vadd.f32 %v561, %v629
  %v631 = vpop.f32.mrb[0].mxu0
  %632 = vmatprep.mubr.f32.mxu0 %v275
  %633 = vmatmul.mubr.f32.gmra.mrb[0].mxu0 %v274
  %v634 = vpop.f32.mrb[0].mxu0
  %v635 = vadd.f32 %v561, %v634
  %v636 = vpop.f32.mrb[0].mxu0
  %637 = vmatprep.mubr.f32.mxu0 %v281
  %638 = vmatmul.mubr.f32.gmra.mrb[0].mxu0 %v280
  %v639 = vpop.f32.mrb[0].mxu0
  %v640 = vadd.f32 %v561, %v639
  %v641 = vpop.f32.mrb[0].mxu0
  %642 = vmatprep.mubr.f32.mxu0 %v287
  %643 = vmatmul.mubr.f32.gmra.mrb[0].mxu0 %v286
  %v644 = vpop.f32.mrb[0].mxu0
  %v645 = vadd.f32 %v561, %v644
  %v646 = vpop.f32.mrb[0].mxu0
  %647 = vmatprep.mubr.f32.mxu0 %v293
  %648 = vmatmul.mubr.f32.gmra.mrb[0].mxu0 %v292
  %v649 = vpop.f32.mrb[0].mxu0
  %v650 = vadd.f32 %v561, %v649
  %v651 = vpop.f32.mrb[0].mxu0
  %652 = vmatprep.mubr.f32.mxu0 %v299
  %653 = vmatmul.mubr.f32.gmra.mrb[0].mxu0 %v298
  %v654 = vpop.f32.mrb[0].mxu0
  %v655 = vadd.f32 %v561, %v654
  %v656 = vpop.f32.mrb[0].mxu0
  %657 = vmatprep.mubr.f32.mxu0 %v305
  %658 = vmatmul.mubr.f32.gmra.mrb[0].mxu0 %v304
  %v659 = vpop.f32.mrb[0].mxu0
  %v660 = vadd.f32 %v561, %v659
  %v661 = vpop.f32.mrb[0].mxu0
  %662 = vmatprep.mubr.f32.mxu0 %v311
  %663 = vmatmul.mubr.f32.gmra.mrb[0].mxu0 %v310
  %v664 = vpop.f32.mrb[0].mxu0
  %v665 = vadd.f32 %v561, %v664
  %v666 = vpop.f32.mrb[0].mxu0
  %667 = vmatprep.mubr.f32.mxu0 %v317
  %668 = vmatmul.mubr.f32.gmra.mrb[0].mxu0 %v316
  %v669 = vpop.f32.mrb[0].mxu0
  %v670 = vadd.f32 %v561, %v669
  %v671 = vpop.f32.mrb[0].mxu0
  %672 = vmatprep.mubr.f32.mxu0 %v323
  %673 = vmatmul.mubr.f32.gmra.mrb[0].mxu0 %v322
  %v674 = vpop.f32.mrb[0].mxu0
  %v675 = vadd.f32 %v561, %v674
  %v676 = vpop.f32.mrb[0].mxu0
  %677 = vmatprep.mubr.f32.mxu0 %v329
  %678 = vmatmul.mubr.f32.gmra.mrb[0].mxu0 %v328
  %v679 = vpop.f32.mrb[0].mxu0
  %v680 = vadd.f32 %v561, %v679
  %v681 = vpop.f32.mrb[0].mxu0
  %682 = vmatprep.mubr.f32.mxu0 %v335
  %683 = vmatmul.mubr.f32.gmra.mrb[0].mxu0 %v334
  %v684 = vpop.f32.mrb[0].mxu0
  %v685 = vadd.f32 %v561, %v684
  %v686 = vpop.f32.mrb[0].mxu0
  %687 = vmatprep.mubr.f32.mxu0 %v341
  %688 = vmatmul.mubr.f32.gmra.mrb[0].mxu0 %v340
  %v689 = vpop.f32.mrb[0].mxu0
  %v690 = vadd.f32 %v561, %v689
  %v691 = vpop.f32.mrb[0].mxu0
  %692 = vmatprep.mubr.f32.mxu0 %v347
  %693 = vmatmul.mubr.f32.gmra.mrb[0].mxu0 %v346
  %v694 = vpop.f32.mrb[0].mxu0
  %v695 = vadd.f32 %v561, %v694
  %v696 = vpop.f32.mrb[0].mxu0
  %697 = vmatprep.mubr.f32.mxu0 %v353
  %698 = vmatmul.mubr.f32.gmra.mrb[0].mxu0 %v352
  %v699 = vpop.f32.mrb[0].mxu0
  %v700 = vadd.f32 %v561, %v699
  %v701 = vpop.f32.mrb[0].mxu0
  %702 = vmatprep.mubr.f32.mxu0 %v359
  %703 = vmatmul.mubr.f32.gmra.mrb[0].mxu0 %v358
  %v704 = vpop.f32.mrb[0].mxu0
  %v705 = vadd.f32 %v561, %v704
  %v706 = vpop.f32.mrb[0].mxu0
  %707 = vmatprep.mubr.f32.mxu0 %v365
  %708 = vmatmul.mubr.f32.gmra.mrb[0].mxu0 %v364
  %v709 = vpop.f32.mrb[0].mxu0
  %v710 = vadd.f32 %v561, %v709
  %v711 = vpop.f32.mrb[0].mxu0
  %712 = vmatprep.mubr.f32.mxu0 %v371
  %713 = vmatmul.mubr.f32.gmra.mrb[0].mxu0 %v370
  %v714 = vpop.f32.mrb[0].mxu0
  %v715 = vadd.f32 %v561, %v714
  %v716 = vpop.f32.mrb[0].mxu0
  %717 = vmatprep.mubr.f32.mxu0 %v377
  %718 = vmatmul.mubr.f32.gmra.mrb[0].mxu0 %v376
  %v719 = vpop.f32.mrb[0].mxu0
  %v720 = vadd.f32 %v561, %v719
  %v721 = vpop.f32.mrb[0].mxu0
  %722 = vmatprep.mubr.f32.mxu0 %v383
  %723 = vmatmul.mubr.f32.gmra.mrb[0].mxu0 %v382
  %v724 = vpop.f32.mrb[0].mxu0
  %v725 = vadd.f32 %v561, %v724
  %v726 = vpop.f32.mrb[0].mxu0
  %727 = vmatprep.mubr.f32.mxu0 %v389
  %728 = vmatmul.mubr.f32.gmra.mrb[0].mxu0 %v388
  %v729 = vpop.f32.mrb[0].mxu0
  %v730 = vadd.f32 %v561, %v729
  %v731 = vpop.f32.mrb[0].mxu0
  %732 = vmatprep.mubr.f32.mxu0 %v395
  %733 = vmatmul.mubr.f32.gmra.mrb[0].mxu0 %v394
  %v734 = vpop.f32.mrb[0].mxu0
  %v735 = vadd.f32 %v561, %v734
  %v736 = vpop.f32.mrb[0].mxu0
  %737 = vmatprep.mubr.f32.mxu0 %v401
  %738 = vmatmul.mubr.f32.gmra.mrb[0].mxu0 %v400
  %v739 = vpop.f32.mrb[0].mxu0
  %v740 = vadd.f32 %v561, %v739
  %v741 = vpop.f32.mrb[0].mxu0
  %742 = vmatprep.mubr.f32.mxu0 %v407
  %743 = vmatmul.mubr.f32.gmra.mrb[0].mxu0 %v406
  %v744 = vpop.f32.mrb[0].mxu0
  %v745 = vadd.f32 %v561, %v744
  %v746 = vpop.f32.mrb[0].mxu0
  %747 = vmatprep.mubr.f32.mxu0 %v413
  %748 = vmatmul.mubr.f32.gmra.mrb[0].mxu0 %v412
  %v749 = vpop.f32.mrb[0].mxu0
  %v750 = vadd.f32 %v561, %v749
  %v751 = vpop.f32.mrb[0].mxu0
  %752 = vmatprep.mubr.f32.mxu0 %v419
  %753 = vmatmul.mubr.f32.gmra.mrb[0].mxu0 %v418
  %v754 = vpop.f32.mrb[0].mxu0
  %v755 = vadd.f32 %v561, %v754
  %v756 = vpop.f32.mrb[0].mxu0
  %757 = vmatprep.mubr.f32.mxu0 %v425
  %758 = vmatmul.mubr.f32.gmra.mrb[0].mxu0 %v424
  %v759 = vpop.f32.mrb[0].mxu0
  %v760 = vadd.f32 %v561, %v759
  %v761 = vpop.f32.mrb[0].mxu0
  %762 = vmatprep.mubr.f32.mxu0 %v431
  %763 = vmatmul.mubr.f32.gmra.mrb[0].mxu0 %v430
  %v764 = vpop.f32.mrb[0].mxu0
  %v765 = vadd.f32 %v561, %v764
  %v766 = vpop.f32.mrb[0].mxu0
  %767 = vmatprep.mubr.f32.mxu0 %v437
  %768 = vmatmul.mubr.f32.gmra.mrb[0].mxu0 %v436
  %v769 = vpop.f32.mrb[0].mxu0
  %v770 = vadd.f32 %v561, %v769
  %v771 = vpop.f32.mrb[0].mxu0
  %772 = vmatprep.mubr.f32.mxu0 %v443
  %773 = vmatmul.mubr.f32.gmra.mrb[0].mxu0 %v442
  %v774 = vpop.f32.mrb[0].mxu0
  %v775 = vadd.f32 %v561, %v774
  %v776 = vpop.f32.mrb[0].mxu0
  %777 = vmatprep.mubr.f32.mxu0 %v449
  %778 = vmatmul.mubr.f32.gmra.mrb[0].mxu0 %v448
  %v779 = vpop.f32.mrb[0].mxu0
  %v780 = vadd.f32 %v561, %v779
  %v781 = vpop.f32.mrb[0].mxu0
  %782 = vmatprep.mubr.f32.mxu0 %v455
  %783 = vmatmul.mubr.f32.gmra.mrb[0].mxu0 %v454
  %v784 = vpop.f32.mrb[0].mxu0
  %v785 = vadd.f32 %v561, %v784
  %v786 = vpop.f32.mrb[0].mxu0
  %787 = vdwg.mxu0
  %788 = vmatprep.subr.mxu0 0.0
  %789 = vmatpush1.msra.mxu0 %v492
  %790 = vmatprep.subr.mxu0 0.0
  %791 = vmatpush1.msra.mxu0 %v493
  %792 = vmatprep.subr.mxu0 0.0
  %793 = vmatpush1.msra.mxu0 %v494
  %794 = vmatprep.subr.mxu0 0.0
  %795 = vmatpush1.msra.mxu0 %v495
  %796 = vmatprep.subr.mxu0 0.0
  %797 = vmatpush1.msra.mxu0 %v496
  %798 = vmatprep.subr.mxu0 0.0
  %799 = vmatpush1.msra.mxu0 %v497
  %800 = vmatprep.subr.mxu0 0.0
  %801 = vmatpush1.msra.mxu0 %v498
  %802 = vmatprep.subr.mxu0 0.0
  %803 = vmatpush1.msra.mxu0 %v499
  %804 = vmatprep.subr.mxu0 0.0
  %805 = vmatpush1.msra.mxu0 %v500
  %806 = vmatprep.subr.mxu0 0.0
  %807 = vmatpush1.msra.mxu0 %v501
  %808 = vmatprep.subr.mxu0 0.0
  %809 = vmatpush1.msra.mxu0 %v502
  %810 = vmatprep.subr.mxu0 0.0
  %811 = vmatpush1.msra.mxu0 %v503
  %812 = vmatprep.subr.mxu0 0.0
  %813 = vmatpush1.msra.mxu0 %v504
  %814 = vmatprep.subr.mxu0 0.0
  %815 = vmatpush1.msra.mxu0 %v505
  %816 = vmatprep.subr.mxu0 0.0
  %817 = vmatpush1.msra.mxu0 %v506
  %818 = vmatprep.subr.mxu0 0.0
  %819 = vmatpush1.msra.mxu0 %v507
  %820 = vmatprep.subr.mxu0 0.0
  %821 = vmatpush1.msra.mxu0 %v508
  %822 = vmatprep.subr.mxu0 0.0
  %823 = vmatpush1.msra.mxu0 %v509
  %824 = vmatprep.subr.mxu0 0.0
  %825 = vmatpush1.msra.mxu0 %v510
  %826 = vmatprep.subr.mxu0 0.0
  %827 = vmatpush1.msra.mxu0 %v511
  %828 = vmatprep.subr.mxu0 0.0
  %829 = vmatpush1.msra.mxu0 %v512
  %830 = vmatprep.subr.mxu0 0.0
  %831 = vmatpush1.msra.mxu0 %v513
  %832 = vmatprep.subr.mxu0 0.0
  %833 = vmatpush1.msra.mxu0 %v514
  %834 = vmatprep.subr.mxu0 0.0
  %835 = vmatpush1.msra.mxu0 %v515
  %836 = vmatprep.subr.mxu0 0.0
  %837 = vmatpush1.msra.mxu0 %v516
  %838 = vmatprep.subr.mxu0 0.0
  %839 = vmatpush1.msra.mxu0 %v517
  %840 = vmatprep.subr.mxu0 0.0
  %841 = vmatpush1.msra.mxu0 %v518
  %842 = vmatprep.subr.mxu0 0.0
  %843 = vmatpush1.msra.mxu0 %v519
  %844 = vmatprep.subr.mxu0 0.0
  %845 = vmatpush1.msra.mxu0 %v520
  %846 = vmatprep.subr.mxu0 0.0
  %847 = vmatpush1.msra.mxu0 %v521
  %848 = vmatprep.subr.mxu0 0.0
  %849 = vmatpush1.msra.mxu0 %v522
  %850 = vmatprep.subr.mxu0 0.0
  %851 = vmatpush1.msra.mxu0 %v523
  %852 = vmatprep.mubr.f32.mxu0 %v271
  %853 = vmatmul.mubr.f32.gmra.mrb[0].mxu0 %v270
  %v854 = vpop.f32.mrb[0].mxu0
  %v855 = vadd.f32 %v630, %v854
  %v856 = vpop.f32.mrb[0].mxu0
  %857 = vmatprep.mubr.f32.mxu0 %v277
  %858 = vmatmul.mubr.f32.gmra.mrb[0].mxu0 %v276
  %v859 = vpop.f32.mrb[0].mxu0
  %v860 = vadd.f32 %v635, %v859
  %v861 = vpop.f32.mrb[0].mxu0
  %862 = vmatprep.mubr.f32.mxu0 %v283
  %863 = vmatmul.mubr.f32.gmra.mrb[0].mxu0 %v282
  %v864 = vpop.f32.mrb[0].mxu0
  %v865 = vadd.f32 %v640, %v864
  %v866 = vpop.f32.mrb[0].mxu0
  %867 = vmatprep.mubr.f32.mxu0 %v289
  %868 = vmatmul.mubr.f32.gmra.mrb[0].mxu0 %v288
  %v869 = vpop.f32.mrb[0].mxu0
  %v870 = vadd.f32 %v645, %v869
  %v871 = vpop.f32.mrb[0].mxu0
  %872 = vmatprep.mubr.f32.mxu0 %v295
  %873 = vmatmul.mubr.f32.gmra.mrb[0].mxu0 %v294
  %v874 = vpop.f32.mrb[0].mxu0
  %v875 = vadd.f32 %v650, %v874
  %v876 = vpop.f32.mrb[0].mxu0
  %877 = vmatprep.mubr.f32.mxu0 %v301
  %878 = vmatmul.mubr.f32.gmra.mrb[0].mxu0 %v300
  %v879 = vpop.f32.mrb[0].mxu0
  %v880 = vadd.f32 %v655, %v879
  %v881 = vpop.f32.mrb[0].mxu0
  %882 = vmatprep.mubr.f32.mxu0 %v307
  %883 = vmatmul.mubr.f32.gmra.mrb[0].mxu0 %v306
  %v884 = vpop.f32.mrb[0].mxu0
  %v885 = vadd.f32 %v660, %v884
  %v886 = vpop.f32.mrb[0].mxu0
  %887 = vmatprep.mubr.f32.mxu0 %v313
  %888 = vmatmul.mubr.f32.gmra.mrb[0].mxu0 %v312
  %v889 = vpop.f32.mrb[0].mxu0
  %v890 = vadd.f32 %v665, %v889
  %v891 = vpop.f32.mrb[0].mxu0
  %892 = vmatprep.mubr.f32.mxu0 %v319
  %893 = vmatmul.mubr.f32.gmra.mrb[0].mxu0 %v318
  %v894 = vpop.f32.mrb[0].mxu0
  %v895 = vadd.f32 %v670, %v894
  %v896 = vpop.f32.mrb[0].mxu0
  %897 = vmatprep.mubr.f32.mxu0 %v325
  %898 = vmatmul.mubr.f32.gmra.mrb[0].mxu0 %v324
  %v899 = vpop.f32.mrb[0].mxu0
  %v900 = vadd.f32 %v675, %v899
  %v901 = vpop.f32.mrb[0].mxu0
  %902 = vmatprep.mubr.f32.mxu0 %v331
  %903 = vmatmul.mubr.f32.gmra.mrb[0].mxu0 %v330
  %v904 = vpop.f32.mrb[0].mxu0
  %v905 = vadd.f32 %v680, %v904
  %v906 = vpop.f32.mrb[0].mxu0
  %907 = vmatprep.mubr.f32.mxu0 %v337
  %908 = vmatmul.mubr.f32.gmra.mrb[0].mxu0 %v336
  %v909 = vpop.f32.mrb[0].mxu0
  %v910 = vadd.f32 %v685, %v909
  %v911 = vpop.f32.mrb[0].mxu0
  %912 = vmatprep.mubr.f32.mxu0 %v343
  %913 = vmatmul.mubr.f32.gmra.mrb[0].mxu0 %v342
  %v914 = vpop.f32.mrb[0].mxu0
  %v915 = vadd.f32 %v690, %v914
  %v916 = vpop.f32.mrb[0].mxu0
  %917 = vmatprep.mubr.f32.mxu0 %v349
  %918 = vmatmul.mubr.f32.gmra.mrb[0].mxu0 %v348
  %v919 = vpop.f32.mrb[0].mxu0
  %v920 = vadd.f32 %v695, %v919
  %v921 = vpop.f32.mrb[0].mxu0
  %922 = vmatprep.mubr.f32.mxu0 %v355
  %923 = vmatmul.mubr.f32.gmra.mrb[0].mxu0 %v354
  %v924 = vpop.f32.mrb[0].mxu0
  %v925 = vadd.f32 %v700, %v924
  %v926 = vpop.f32.mrb[0].mxu0
  %927 = vmatprep.mubr.f32.mxu0 %v361
  %928 = vmatmul.mubr.f32.gmra.mrb[0].mxu0 %v360
  %v929 = vpop.f32.mrb[0].mxu0
  %v930 = vadd.f32 %v705, %v929
  %v931 = vpop.f32.mrb[0].mxu0
  %932 = vmatprep.mubr.f32.mxu0 %v367
  %933 = vmatmul.mubr.f32.gmra.mrb[0].mxu0 %v366
  %v934 = vpop.f32.mrb[0].mxu0
  %v935 = vadd.f32 %v710, %v934
  %v936 = vpop.f32.mrb[0].mxu0
  %937 = vmatprep.mubr.f32.mxu0 %v373
  %938 = vmatmul.mubr.f32.gmra.mrb[0].mxu0 %v372
  %v939 = vpop.f32.mrb[0].mxu0
  %v940 = vadd.f32 %v715, %v939
  %v941 = vpop.f32.mrb[0].mxu0
  %942 = vmatprep.mubr.f32.mxu0 %v379
  %943 = vmatmul.mubr.f32.gmra.mrb[0].mxu0 %v378
  %v944 = vpop.f32.mrb[0].mxu0
  %v945 = vadd.f32 %v720, %v944
  %v946 = vpop.f32.mrb[0].mxu0
  %947 = vmatprep.mubr.f32.mxu0 %v385
  %948 = vmatmul.mubr.f32.gmra.mrb[0].mxu0 %v384
  %v949 = vpop.f32.mrb[0].mxu0
  %v950 = vadd.f32 %v725, %v949
  %v951 = vpop.f32.mrb[0].mxu0
  %952 = vmatprep.mubr.f32.mxu0 %v391
  %953 = vmatmul.mubr.f32.gmra.mrb[0].mxu0 %v390
  %v954 = vpop.f32.mrb[0].mxu0
  %v955 = vadd.f32 %v730, %v954
  %v956 = vpop.f32.mrb[0].mxu0
  %957 = vmatprep.mubr.f32.mxu0 %v397
  %958 = vmatmul.mubr.f32.gmra.mrb[0].mxu0 %v396
  %v959 = vpop.f32.mrb[0].mxu0
  %v960 = vadd.f32 %v735, %v959
  %v961 = vpop.f32.mrb[0].mxu0
  %962 = vmatprep.mubr.f32.mxu0 %v403
  %963 = vmatmul.mubr.f32.gmra.mrb[0].mxu0 %v402
  %v964 = vpop.f32.mrb[0].mxu0
  %v965 = vadd.f32 %v740, %v964
  %v966 = vpop.f32.mrb[0].mxu0
  %967 = vmatprep.mubr.f32.mxu0 %v409
  %968 = vmatmul.mubr.f32.gmra.mrb[0].mxu0 %v408
  %v969 = vpop.f32.mrb[0].mxu0
  %v970 = vadd.f32 %v745, %v969
  %v971 = vpop.f32.mrb[0].mxu0
  %972 = vmatprep.mubr.f32.mxu0 %v415
  %973 = vmatmul.mubr.f32.gmra.mrb[0].mxu0 %v414
  %v974 = vpop.f32.mrb[0].mxu0
  %v975 = vadd.f32 %v750, %v974
  %v976 = vpop.f32.mrb[0].mxu0
  %977 = vmatprep.mubr.f32.mxu0 %v421
  %978 = vmatmul.mubr.f32.gmra.mrb[0].mxu0 %v420
  %v979 = vpop.f32.mrb[0].mxu0
  %v980 = vadd.f32 %v755, %v979
  %v981 = vpop.f32.mrb[0].mxu0
  %982 = vmatprep.mubr.f32.mxu0 %v427
  %983 = vmatmul.mubr.f32.gmra.mrb[0].mxu0 %v426
  %v984 = vpop.f32.mrb[0].mxu0
  %v985 = vadd.f32 %v760, %v984
  %v986 = vpop.f32.mrb[0].mxu0
  %987 = vmatprep.mubr.f32.mxu0 %v433
  %988 = vmatmul.mubr.f32.gmra.mrb[0].mxu0 %v432
  %v989 = vpop.f32.mrb[0].mxu0
  %v990 = vadd.f32 %v765, %v989
  %v991 = vpop.f32.mrb[0].mxu0
  %992 = vmatprep.mubr.f32.mxu0 %v439
  %993 = vmatmul.mubr.f32.gmra.mrb[0].mxu0 %v438
  %v994 = vpop.f32.mrb[0].mxu0
  %v995 = vadd.f32 %v770, %v994
  %v996 = vpop.f32.mrb[0].mxu0
  %997 = vmatprep.mubr.f32.mxu0 %v445
  %998 = vmatmul.mubr.f32.gmra.mrb[0].mxu0 %v444
  %v999 = vpop.f32.mrb[0].mxu0
  %v1000 = vadd.f32 %v775, %v999
  %v1001 = vpop.f32.mrb[0].mxu0
  %1002 = vmatprep.mubr.f32.mxu0 %v451
  %1003 = vmatmul.mubr.f32.gmra.mrb[0].mxu0 %v450
  %v1004 = vpop.f32.mrb[0].mxu0
  %v1005 = vadd.f32 %v780, %v1004
  %v1006 = vpop.f32.mrb[0].mxu0
  %1007 = vmatprep.mubr.f32.mxu0 %v457
  %1008 = vmatmul.mubr.f32.gmra.mrb[0].mxu0 %v456
  %v1009 = vpop.f32.mrb[0].mxu0
  %v1010 = vadd.f32 %v785, %v1009
  %v1011 = vpop.f32.mrb[0].mxu0
  %1012 = vdwg.mxu0
  %1013 = vmatprep.subr.mxu0 0.0
  %1014 = vmatpush1.msra.mxu0 %v524
  %1015 = vmatprep.subr.mxu0 0.0
  %1016 = vmatpush1.msra.mxu0 %v525
  %1017 = vmatprep.subr.mxu0 0.0
  %1018 = vmatpush1.msra.mxu0 %v526
  %1019 = vmatprep.subr.mxu0 0.0
  %1020 = vmatpush1.msra.mxu0 %v527
  %1021 = vmatprep.subr.mxu0 0.0
  %1022 = vmatpush1.msra.mxu0 %v528
  %1023 = vmatprep.subr.mxu0 0.0
  %1024 = vmatpush1.msra.mxu0 %v529
  %1025 = vmatprep.subr.mxu0 0.0
  %1026 = vmatpush1.msra.mxu0 %v530
  %1027 = vmatprep.subr.mxu0 0.0
  %1028 = vmatpush1.msra.mxu0 %v531
  %1029 = vmatprep.subr.mxu0 0.0
  %1030 = vmatpush1.msra.mxu0 %v532
  %1031 = vmatprep.subr.mxu0 0.0
  %1032 = vmatpush1.msra.mxu0 %v533
  %1033 = vmatprep.subr.mxu0 0.0
  %1034 = vmatpush1.msra.mxu0 %v534
  %1035 = vmatprep.subr.mxu0 0.0
  %1036 = vmatpush1.msra.mxu0 %v535
  %1037 = vmatprep.subr.mxu0 0.0
  %1038 = vmatpush1.msra.mxu0 %v536
  %1039 = vmatprep.subr.mxu0 0.0
  %1040 = vmatpush1.msra.mxu0 %v537
  %1041 = vmatprep.subr.mxu0 0.0
  %1042 = vmatpush1.msra.mxu0 %v538
  %1043 = vmatprep.subr.mxu0 0.0
  %1044 = vmatpush1.msra.mxu0 %v539
  %1045 = vmatprep.subr.mxu0 0.0
  %1046 = vmatpush1.msra.mxu0 %v540
  %1047 = vmatprep.subr.mxu0 0.0
  %1048 = vmatpush1.msra.mxu0 %v541
  %1049 = vmatprep.subr.mxu0 0.0
  %1050 = vmatpush1.msra.mxu0 %v542
  %1051 = vmatprep.subr.mxu0 0.0
  %1052 = vmatpush1.msra.mxu0 %v543
  %1053 = vmatprep.subr.mxu0 0.0
  %1054 = vmatpush1.msra.mxu0 %v544
  %1055 = vmatprep.subr.mxu0 0.0
  %1056 = vmatpush1.msra.mxu0 %v545
  %1057 = vmatprep.subr.mxu0 0.0
  %1058 = vmatpush1.msra.mxu0 %v546
  %1059 = vmatprep.subr.mxu0 0.0
  %1060 = vmatpush1.msra.mxu0 %v547
  %1061 = vmatprep.subr.mxu0 0.0
  %1062 = vmatpush1.msra.mxu0 %v548
  %1063 = vmatprep.subr.mxu0 0.0
  %1064 = vmatpush1.msra.mxu0 %v549
  %1065 = vmatprep.subr.mxu0 0.0
  %1066 = vmatpush1.msra.mxu0 %v550
  %1067 = vmatprep.subr.mxu0 0.0
  %1068 = vmatpush1.msra.mxu0 %v551
  %1069 = vmatprep.subr.mxu0 0.0
  %1070 = vmatpush1.msra.mxu0 %v552
  %1071 = vmatprep.subr.mxu0 0.0
  %1072 = vmatpush1.msra.mxu0 %v553
  %1073 = vmatprep.subr.mxu0 0.0
  %1074 = vmatpush1.msra.mxu0 %v554
  %1075 = vmatprep.subr.mxu0 0.0
  %1076 = vmatpush1.msra.mxu0 %v555
  %1077 = vmatprep.mubr.f32.mxu0 %v273
  %1078 = vmatmul.mubr.f32.gmra.mrb[0].mxu0 %v272
  %v1079 = vpop.f32.mrb[0].mxu0
  %v1080 = vadd.f32 %v855, %v1079
  %v1081 = vpop.f32.mrb[0].mxu0
  %1082 = vmatprep.mubr.f32.mxu0 %v279
  %1083 = vmatmul.mubr.f32.gmra.mrb[0].mxu0 %v278
  %v1084 = vpop.f32.mrb[0].mxu0
  %v1085 = vadd.f32 %v860, %v1084
  %v1086 = vpop.f32.mrb[0].mxu0
  %1087 = vmatprep.mubr.f32.mxu0 %v285
  %1088 = vmatmul.mubr.f32.gmra.mrb[0].mxu0 %v284
  %v1089 = vpop.f32.mrb[0].mxu0
  %v1090 = vadd.f32 %v865, %v1089
  %v1091 = vpop.f32.mrb[0].mxu0
  %1092 = vmatprep.mubr.f32.mxu0 %v291
  %1093 = vmatmul.mubr.f32.gmra.mrb[0].mxu0 %v290
  %v1094 = vpop.f32.mrb[0].mxu0
  %v1095 = vadd.f32 %v870, %v1094
  %v1096 = vpop.f32.mrb[0].mxu0
  %1097 = vmatprep.mubr.f32.mxu0 %v297
  %1098 = vmatmul.mubr.f32.gmra.mrb[0].mxu0 %v296
  %v1099 = vpop.f32.mrb[0].mxu0
  %v1100 = vadd.f32 %v875, %v1099
  %v1101 = vpop.f32.mrb[0].mxu0
  %1102 = vmatprep.mubr.f32.mxu0 %v303
  %1103 = vmatmul.mubr.f32.gmra.mrb[0].mxu0 %v302
  %v1104 = vpop.f32.mrb[0].mxu0
  %v1105 = vadd.f32 %v880, %v1104
  %v1106 = vpop.f32.mrb[0].mxu0
  %1107 = vmatprep.mubr.f32.mxu0 %v309
  %1108 = vmatmul.mubr.f32.gmra.mrb[0].mxu0 %v308
  %v1109 = vpop.f32.mrb[0].mxu0
  %v1110 = vadd.f32 %v885, %v1109
  %v1111 = vpop.f32.mrb[0].mxu0
  %1112 = vmatprep.mubr.f32.mxu0 %v315
  %1113 = vmatmul.mubr.f32.gmra.mrb[0].mxu0 %v314
  %v1114 = vpop.f32.mrb[0].mxu0
  %v1115 = vadd.f32 %v890, %v1114
  %v1116 = vpop.f32.mrb[0].mxu0
  %1117 = vmatprep.mubr.f32.mxu0 %v321
  %1118 = vmatmul.mubr.f32.gmra.mrb[0].mxu0 %v320
  %v1119 = vpop.f32.mrb[0].mxu0
  %v1120 = vadd.f32 %v895, %v1119
  %v1121 = vpop.f32.mrb[0].mxu0
  %1122 = vmatprep.mubr.f32.mxu0 %v327
  %1123 = vmatmul.mubr.f32.gmra.mrb[0].mxu0 %v326
  %v1124 = vpop.f32.mrb[0].mxu0
  %v1125 = vadd.f32 %v900, %v1124
  %v1126 = vpop.f32.mrb[0].mxu0
  %1127 = vmatprep.mubr.f32.mxu0 %v333
  %1128 = vmatmul.mubr.f32.gmra.mrb[0].mxu0 %v332
  %v1129 = vpop.f32.mrb[0].mxu0
  %v1130 = vadd.f32 %v905, %v1129
  %v1131 = vpop.f32.mrb[0].mxu0
  %1132 = vmatprep.mubr.f32.mxu0 %v339
  %1133 = vmatmul.mubr.f32.gmra.mrb[0].mxu0 %v338
  %v1134 = vpop.f32.mrb[0].mxu0
  %v1135 = vadd.f32 %v910, %v1134
  %v1136 = vpop.f32.mrb[0].mxu0
  %1137 = vmatprep.mubr.f32.mxu0 %v345
  %1138 = vmatmul.mubr.f32.gmra.mrb[0].mxu0 %v344
  %v1139 = vpop.f32.mrb[0].mxu0
  %v1140 = vadd.f32 %v915, %v1139
  %v1141 = vpop.f32.mrb[0].mxu0
  %1142 = vmatprep.mubr.f32.mxu0 %v351
  %1143 = vmatmul.mubr.f32.gmra.mrb[0].mxu0 %v350
  %v1144 = vpop.f32.mrb[0].mxu0
  %v1145 = vadd.f32 %v920, %v1144
  %v1146 = vpop.f32.mrb[0].mxu0
  %1147 = vmatprep.mubr.f32.mxu0 %v357
  %1148 = vmatmul.mubr.f32.gmra.mrb[0].mxu0 %v356
  %v1149 = vpop.f32.mrb[0].mxu0
  %v1150 = vadd.f32 %v925, %v1149
  %v1151 = vpop.f32.mrb[0].mxu0
  %1152 = vmatprep.mubr.f32.mxu0 %v363
  %1153 = vmatmul.mubr.f32.gmra.mrb[0].mxu0 %v362
  %v1154 = vpop.f32.mrb[0].mxu0
  %v1155 = vadd.f32 %v930, %v1154
  %v1156 = vpop.f32.mrb[0].mxu0
  %1157 = vmatprep.mubr.f32.mxu0 %v369
  %1158 = vmatmul.mubr.f32.gmra.mrb[0].mxu0 %v368
  %v1159 = vpop.f32.mrb[0].mxu0
  %v1160 = vadd.f32 %v935, %v1159
  %v1161 = vpop.f32.mrb[0].mxu0
  %1162 = vmatprep.mubr.f32.mxu0 %v375
  %1163 = vmatmul.mubr.f32.gmra.mrb[0].mxu0 %v374
  %v1164 = vpop.f32.mrb[0].mxu0
  %v1165 = vadd.f32 %v940, %v1164
  %v1166 = vpop.f32.mrb[0].mxu0
  %1167 = vmatprep.mubr.f32.mxu0 %v381
  %1168 = vmatmul.mubr.f32.gmra.mrb[0].mxu0 %v380
  %v1169 = vpop.f32.mrb[0].mxu0
  %v1170 = vadd.f32 %v945, %v1169
  %v1171 = vpop.f32.mrb[0].mxu0
  %1172 = vmatprep.mubr.f32.mxu0 %v387
  %1173 = vmatmul.mubr.f32.gmra.mrb[0].mxu0 %v386
  %v1174 = vpop.f32.mrb[0].mxu0
  %v1175 = vadd.f32 %v950, %v1174
  %v1176 = vpop.f32.mrb[0].mxu0
  %1177 = vmatprep.mubr.f32.mxu0 %v393
  %1178 = vmatmul.mubr.f32.gmra.mrb[0].mxu0 %v392
  %v1179 = vpop.f32.mrb[0].mxu0
  %v1180 = vadd.f32 %v955, %v1179
  %v1181 = vpop.f32.mrb[0].mxu0
  %1182 = vmatprep.mubr.f32.mxu0 %v399
  %1183 = vmatmul.mubr.f32.gmra.mrb[0].mxu0 %v398
  %v1184 = vpop.f32.mrb[0].mxu0
  %v1185 = vadd.f32 %v960, %v1184
  %v1186 = vpop.f32.mrb[0].mxu0
  %1187 = vmatprep.mubr.f32.mxu0 %v405
  %1188 = vmatmul.mubr.f32.gmra.mrb[0].mxu0 %v404
  %v1189 = vpop.f32.mrb[0].mxu0
  %v1190 = vadd.f32 %v965, %v1189
  %v1191 = vpop.f32.mrb[0].mxu0
  %1192 = vmatprep.mubr.f32.mxu0 %v411
  %1193 = vmatmul.mubr.f32.gmra.mrb[0].mxu0 %v410
  %v1194 = vpop.f32.mrb[0].mxu0
  %v1195 = vadd.f32 %v970, %v1194
  %v1196 = vpop.f32.mrb[0].mxu0
  %1197 = vmatprep.mubr.f32.mxu0 %v417
  %1198 = vmatmul.mubr.f32.gmra.mrb[0].mxu0 %v416
  %v1199 = vpop.f32.mrb[0].mxu0
  %v1200 = vadd.f32 %v975, %v1199
  %v1201 = vpop.f32.mrb[0].mxu0
  %1202 = vmatprep.mubr.f32.mxu0 %v423
  %1203 = vmatmul.mubr.f32.gmra.mrb[0].mxu0 %v422
  %v1204 = vpop.f32.mrb[0].mxu0
  %v1205 = vadd.f32 %v980, %v1204
  %v1206 = vpop.f32.mrb[0].mxu0
  %1207 = vmatprep.mubr.f32.mxu0 %v429
  %1208 = vmatmul.mubr.f32.gmra.mrb[0].mxu0 %v428
  %v1209 = vpop.f32.mrb[0].mxu0
  %v1210 = vadd.f32 %v985, %v1209
  %v1211 = vpop.f32.mrb[0].mxu0
  %1212 = vmatprep.mubr.f32.mxu0 %v435
  %1213 = vmatmul.mubr.f32.gmra.mrb[0].mxu0 %v434
  %v1214 = vpop.f32.mrb[0].mxu0
  %v1215 = vadd.f32 %v990, %v1214
  %v1216 = vpop.f32.mrb[0].mxu0
  %1217 = vmatprep.mubr.f32.mxu0 %v441
  %1218 = vmatmul.mubr.f32.gmra.mrb[0].mxu0 %v440
  %v1219 = vpop.f32.mrb[0].mxu0
  %v1220 = vadd.f32 %v995, %v1219
  %v1221 = vpop.f32.mrb[0].mxu0
  %1222 = vmatprep.mubr.f32.mxu0 %v447
  %1223 = vmatmul.mubr.f32.gmra.mrb[0].mxu0 %v446
  %v1224 = vpop.f32.mrb[0].mxu0
  %v1225 = vadd.f32 %v1000, %v1224
  %v1226 = vpop.f32.mrb[0].mxu0
  %1227 = vmatprep.mubr.f32.mxu0 %v453
  %1228 = vmatmul.mubr.f32.gmra.mrb[0].mxu0 %v452
  %v1229 = vpop.f32.mrb[0].mxu0
  %v1230 = vadd.f32 %v1005, %v1229
  %v1231 = vpop.f32.mrb[0].mxu0
  %1232 = vmatprep.mubr.f32.mxu0 %v459
  %1233 = vmatmul.mubr.f32.gmra.mrb[0].mxu0 %v458
  %v1234 = vpop.f32.mrb[0].mxu0
  %v1235 = vadd.f32 %v1010, %v1234
  %v1236 = vpop.f32.mrb[0].mxu0
  %1237 = vdwg.mxu0
  %v1238 = vmax.f32 %v1080, 0.0
  %v1239 = vmax.f32 %v1085, 0.0
  %v1240 = vmax.f32 %v1090, 0.0
  %v1241 = vmax.f32 %v1095, 0.0
  %v1242 = vmax.f32 %v1100, 0.0
  %v1243 = vmax.f32 %v1105, 0.0
  %v1244 = vmax.f32 %v1110, 0.0
  %v1245 = vmax.f32 %v1115, 0.0
  %v1246 = vmax.f32 %v1120, 0.0
  %v1247 = vmax.f32 %v1125, 0.0
  %v1248 = vmax.f32 %v1130, 0.0
  %v1249 = vmax.f32 %v1135, 0.0
  %v1250 = vmax.f32 %v1140, 0.0
  %v1251 = vmax.f32 %v1145, 0.0
  %v1252 = vmax.f32 %v1150, 0.0
  %v1253 = vmax.f32 %v1155, 0.0
  %v1254 = vmax.f32 %v1160, 0.0
  %v1255 = vmax.f32 %v1165, 0.0
  %v1256 = vmax.f32 %v1170, 0.0
  %v1257 = vmax.f32 %v1175, 0.0
  %v1258 = vmax.f32 %v1180, 0.0
  %v1259 = vmax.f32 %v1185, 0.0
  %v1260 = vmax.f32 %v1190, 0.0
  %v1261 = vmax.f32 %v1195, 0.0
  %v1262 = vmax.f32 %v1200, 0.0
  %v1263 = vmax.f32 %v1205, 0.0
  %v1264 = vmax.f32 %v1210, 0.0
  %v1265 = vmax.f32 %v1215, 0.0
  %v1266 = vmax.f32 %v1220, 0.0
  %v1267 = vmax.f32 %v1225, 0.0
  %v1268 = vmax.f32 %v1230, 0.0
  %v1269 = vmax.f32 %v1235, 0.0
  %v1270 = vmin.f32 %v1238, 1.0
  %v1271 = vmin.f32 %v1239, 1.0
  %v1272 = vmin.f32 %v1240, 1.0
  %v1273 = vmin.f32 %v1241, 1.0
  %v1274 = vmin.f32 %v1242, 1.0
  %v1275 = vmin.f32 %v1243, 1.0
  %v1276 = vmin.f32 %v1244, 1.0
  %v1277 = vmin.f32 %v1245, 1.0
  %v1278 = vmin.f32 %v1246, 1.0
  %v1279 = vmin.f32 %v1247, 1.0
  %v1280 = vmin.f32 %v1248, 1.0
  %v1281 = vmin.f32 %v1249, 1.0
  %v1282 = vmin.f32 %v1250, 1.0
  %v1283 = vmin.f32 %v1251, 1.0
  %v1284 = vmin.f32 %v1252, 1.0
  %v1285 = vmin.f32 %v1253, 1.0
  %v1286 = vmin.f32 %v1254, 1.0
  %v1287 = vmin.f32 %v1255, 1.0
  %v1288 = vmin.f32 %v1256, 1.0
  %v1289 = vmin.f32 %v1257, 1.0
  %v1290 = vmin.f32 %v1258, 1.0
  %v1291 = vmin.f32 %v1259, 1.0
  %v1292 = vmin.f32 %v1260, 1.0
  %v1293 = vmin.f32 %v1261, 1.0
  %v1294 = vmin.f32 %v1262, 1.0
  %v1295 = vmin.f32 %v1263, 1.0
  %v1296 = vmin.f32 %v1264, 1.0
  %v1297 = vmin.f32 %v1265, 1.0
  %v1298 = vmin.f32 %v1266, 1.0
  %v1299 = vmin.f32 %v1267, 1.0
  %v1300 = vmin.f32 %v1268, 1.0
  %v1301 = vmin.f32 %v1269, 1.0
  %v1302 = vld [vmem:[%s3] sm:$0xff]
  %v1303 = vld [vmem:[%s3 + $0x8] sm:$0xff]
  %v1304 = vld [vmem:[%s4] sm:$0x1]
  %v1306 = vlaneseq
  %v1307 = vshrl.u32 %v1306, 7
  %v1308 = vsub.s32 0, %v1307
  %v1309 = vrot.slane %v1304, %v1308
  %vm1311 = vcmask 130048
  %v1313 = vsel %vm1311, %v1270, 0
  %v1316 = vsel %vm1311, %v1271, 0
  %v1319 = vsel %vm1311, %v1272, 0
  %v1322 = vsel %vm1311, %v1273, 0
  %v1325 = vsel %vm1311, %v1274, 0
  %v1328 = vsel %vm1311, %v1275, 0
  %v1331 = vsel %vm1311, %v1276, 0
  %v1334 = vsel %vm1311, %v1277, 0
  %v1337 = vsel %vm1311, %v1278, 0
  %v1340 = vsel %vm1311, %v1279, 0
  %v1343 = vsel %vm1311, %v1280, 0
  %v1346 = vsel %vm1311, %v1281, 0
  %v1349 = vsel %vm1311, %v1282, 0
  %v1352 = vsel %vm1311, %v1283, 0
  %v1355 = vsel %vm1311, %v1284, 0
  %v1358 = vsel %vm1311, %v1285, 0
  %v1361 = vsel %vm1311, %v1286, 0
  %v1364 = vsel %vm1311, %v1287, 0
  %v1367 = vsel %vm1311, %v1288, 0
  %v1370 = vsel %vm1311, %v1289, 0
  %v1373 = vsel %vm1311, %v1290, 0
  %v1376 = vsel %vm1311, %v1291, 0
  %v1379 = vsel %vm1311, %v1292, 0
  %v1382 = vsel %vm1311, %v1293, 0
  %v1385 = vsel %vm1311, %v1294, 0
  %v1388 = vsel %vm1311, %v1295, 0
  %v1391 = vsel %vm1311, %v1296, 0
  %v1394 = vsel %vm1311, %v1297, 0
  %v1397 = vsel %vm1311, %v1298, 0
  %v1400 = vsel %vm1311, %v1299, 0
  %v1403 = vsel %vm1311, %v1300, 0
  %v1406 = vsel %vm1311, %v1301, 0
  %1408 = vmatprep.subr.mxu0 0.0
  %1409 = vmatpush1.msra.mxu0 %v1302
  %1410 = vmatprep.subr.mxu0 0.0
  %1411 = vmatpush1.msra.mxu0 %v1303
  %1412 = vmatprep.subr.mxu0 0.0
  %1413 = vmatpush1.msra.mxu0 0.0
  %1414 = vmatprep.subr.mxu0 0.0
  %1415 = vmatpush1.msra.mxu0 0.0
  %1416 = vmatprep.subr.mxu0 0.0
  %1417 = vmatpush1.msra.mxu0 0.0
  %1418 = vmatprep.subr.mxu0 0.0
  %1419 = vmatpush1.msra.mxu0 0.0
  %1420 = vmatprep.subr.mxu0 0.0
  %1421 = vmatpush1.msra.mxu0 0.0
  %1422 = vmatprep.subr.mxu0 0.0
  %1423 = vmatpush1.msra.mxu0 0.0
  %1424 = vmatprep.subr.mxu0 0.0
  %1425 = vmatpush1.msra.mxu0 0.0
  %1426 = vmatprep.subr.mxu0 0.0
  %1427 = vmatpush1.msra.mxu0 0.0
  %1428 = vmatprep.subr.mxu0 0.0
  %1429 = vmatpush1.msra.mxu0 0.0
  %1430 = vmatprep.subr.mxu0 0.0
  %1431 = vmatpush1.msra.mxu0 0.0
  %1432 = vmatprep.subr.mxu0 0.0
  %1433 = vmatpush1.msra.mxu0 0.0
  %1434 = vmatprep.subr.mxu0 0.0
  %1435 = vmatpush1.msra.mxu0 0.0
  %1436 = vmatprep.subr.mxu0 0.0
  %1437 = vmatpush1.msra.mxu0 0.0
  %1438 = vmatprep.subr.mxu0 0.0
  %1439 = vmatpush1.msra.mxu0 0.0
  %1440 = vmatprep.subr.mxu0 0.0
  %1441 = vmatpush1.msra.mxu0 0.0
  %1442 = vmatprep.subr.mxu0 0.0
  %1443 = vmatpush1.msra.mxu0 0.0
  %1444 = vmatprep.subr.mxu0 0.0
  %1445 = vmatpush1.msra.mxu0 0.0
  %1446 = vmatprep.subr.mxu0 0.0
  %1447 = vmatpush1.msra.mxu0 0.0
  %1448 = vmatprep.subr.mxu0 0.0
  %1449 = vmatpush1.msra.mxu0 0.0
  %1450 = vmatprep.subr.mxu0 0.0
  %1451 = vmatpush1.msra.mxu0 0.0
  %1452 = vmatprep.subr.mxu0 0.0
  %1453 = vmatpush1.msra.mxu0 0.0
  %1454 = vmatprep.subr.mxu0 0.0
  %1455 = vmatpush1.msra.mxu0 0.0
  %1456 = vmatprep.subr.mxu0 0.0
  %1457 = vmatpush1.msra.mxu0 0.0
  %1458 = vmatprep.subr.mxu0 0.0
  %1459 = vmatpush1.msra.mxu0 0.0
  %1460 = vmatprep.subr.mxu0 0.0
  %1461 = vmatpush1.msra.mxu0 0.0
  %1462 = vmatprep.subr.mxu0 0.0
  %1463 = vmatpush1.msra.mxu0 0.0
  %1464 = vmatprep.subr.mxu0 0.0
  %1465 = vmatpush1.msra.mxu0 0.0
  %1466 = vmatprep.subr.mxu0 0.0
  %1467 = vmatpush1.msra.mxu0 0.0
  %1468 = vmatprep.subr.mxu0 0.0
  %1469 = vmatpush1.msra.mxu0 0.0
  %1470 = vmatprep.subr.mxu0 0.0
  %1471 = vmatpush1.msra.mxu0 0.0
  %1472 = vmatprep.mubr.f32.mxu0 0.0
  %1473 = vmatmul.mubr.f32.gmra.mrb[0].mxu0 %v1313
  %v1474 = vpop.f32.mrb[0].mxu0
  %v1475 = vadd.f32 %v1309, %v1474
  %v1476 = vpop.f32.mrb[0].mxu0
  %1477 = vmatprep.mubr.f32.mxu0 0.0
  %1478 = vmatmul.mubr.f32.gmra.mrb[0].mxu0 %v1316
  %v1479 = vpop.f32.mrb[0].mxu0
  %v1480 = vadd.f32 %v1309, %v1479
  %v1481 = vpop.f32.mrb[0].mxu0
  %1482 = vmatprep.mubr.f32.mxu0 0.0
  %1483 = vmatmul.mubr.f32.gmra.mrb[0].mxu0 %v1319
  %v1484 = vpop.f32.mrb[0].mxu0
  %v1485 = vadd.f32 %v1309, %v1484
  %v1486 = vpop.f32.mrb[0].mxu0
  %1487 = vmatprep.mubr.f32.mxu0 0.0
  %1488 = vmatmul.mubr.f32.gmra.mrb[0].mxu0 %v1322
  %v1489 = vpop.f32.mrb[0].mxu0
  %v1490 = vadd.f32 %v1309, %v1489
  %v1491 = vpop.f32.mrb[0].mxu0
  %1492 = vmatprep.mubr.f32.mxu0 0.0
  %1493 = vmatmul.mubr.f32.gmra.mrb[0].mxu0 %v1325
  %v1494 = vpop.f32.mrb[0].mxu0
  %v1495 = vadd.f32 %v1309, %v1494
  %v1496 = vpop.f32.mrb[0].mxu0
  %1497 = vmatprep.mubr.f32.mxu0 0.0
  %1498 = vmatmul.mubr.f32.gmra.mrb[0].mxu0 %v1328
  %v1499 = vpop.f32.mrb[0].mxu0
  %v1500 = vadd.f32 %v1309, %v1499
  %v1501 = vpop.f32.mrb[0].mxu0
  %1502 = vmatprep.mubr.f32.mxu0 0.0
  %1503 = vmatmul.mubr.f32.gmra.mrb[0].mxu0 %v1331
  %v1504 = vpop.f32.mrb[0].mxu0
  %v1505 = vadd.f32 %v1309, %v1504
  %v1506 = vpop.f32.mrb[0].mxu0
  %1507 = vmatprep.mubr.f32.mxu0 0.0
  %1508 = vmatmul.mubr.f32.gmra.mrb[0].mxu0 %v1334
  %v1509 = vpop.f32.mrb[0].mxu0
  %v1510 = vadd.f32 %v1309, %v1509
  %v1511 = vpop.f32.mrb[0].mxu0
  %1512 = vmatprep.mubr.f32.mxu0 0.0
  %1513 = vmatmul.mubr.f32.gmra.mrb[0].mxu0 %v1337
  %v1514 = vpop.f32.mrb[0].mxu0
  %v1515 = vadd.f32 %v1309, %v1514
  %v1516 = vpop.f32.mrb[0].mxu0
  %1517 = vmatprep.mubr.f32.mxu0 0.0
  %1518 = vmatmul.mubr.f32.gmra.mrb[0].mxu0 %v1340
  %v1519 = vpop.f32.mrb[0].mxu0
  %v1520 = vadd.f32 %v1309, %v1519
  %v1521 = vpop.f32.mrb[0].mxu0
  %1522 = vmatprep.mubr.f32.mxu0 0.0
  %1523 = vmatmul.mubr.f32.gmra.mrb[0].mxu0 %v1343
  %v1524 = vpop.f32.mrb[0].mxu0
  %v1525 = vadd.f32 %v1309, %v1524
  %v1526 = vpop.f32.mrb[0].mxu0
  %1527 = vmatprep.mubr.f32.mxu0 0.0
  %1528 = vmatmul.mubr.f32.gmra.mrb[0].mxu0 %v1346
  %v1529 = vpop.f32.mrb[0].mxu0
  %v1530 = vadd.f32 %v1309, %v1529
  %v1531 = vpop.f32.mrb[0].mxu0
  %1532 = vmatprep.mubr.f32.mxu0 0.0
  %1533 = vmatmul.mubr.f32.gmra.mrb[0].mxu0 %v1349
  %v1534 = vpop.f32.mrb[0].mxu0
  %v1535 = vadd.f32 %v1309, %v1534
  %v1536 = vpop.f32.mrb[0].mxu0
  %1537 = vmatprep.mubr.f32.mxu0 0.0
  %1538 = vmatmul.mubr.f32.gmra.mrb[0].mxu0 %v1352
  %v1539 = vpop.f32.mrb[0].mxu0
  %v1540 = vadd.f32 %v1309, %v1539
  %v1541 = vpop.f32.mrb[0].mxu0
  %1542 = vmatprep.mubr.f32.mxu0 0.0
  %1543 = vmatmul.mubr.f32.gmra.mrb[0].mxu0 %v1355
  %v1544 = vpop.f32.mrb[0].mxu0
  %v1545 = vadd.f32 %v1309, %v1544
  %v1546 = vpop.f32.mrb[0].mxu0
  %1547 = vmatprep.mubr.f32.mxu0 0.0
  %1548 = vmatmul.mubr.f32.gmra.mrb[0].mxu0 %v1358
  %v1549 = vpop.f32.mrb[0].mxu0
  %v1550 = vadd.f32 %v1309, %v1549
  %v1551 = vpop.f32.mrb[0].mxu0
  %1552 = vmatprep.mubr.f32.mxu0 0.0
  %1553 = vmatmul.mubr.f32.gmra.mrb[0].mxu0 %v1361
  %v1554 = vpop.f32.mrb[0].mxu0
  %v1555 = vadd.f32 %v1309, %v1554
  %v1556 = vpop.f32.mrb[0].mxu0
  %1557 = vmatprep.mubr.f32.mxu0 0.0
  %1558 = vmatmul.mubr.f32.gmra.mrb[0].mxu0 %v1364
  %v1559 = vpop.f32.mrb[0].mxu0
  %v1560 = vadd.f32 %v1309, %v1559
  %v1561 = vpop.f32.mrb[0].mxu0
  %1562 = vmatprep.mubr.f32.mxu0 0.0
  %1563 = vmatmul.mubr.f32.gmra.mrb[0].mxu0 %v1367
  %v1564 = vpop.f32.mrb[0].mxu0
  %v1565 = vadd.f32 %v1309, %v1564
  %v1566 = vpop.f32.mrb[0].mxu0
  %1567 = vmatprep.mubr.f32.mxu0 0.0
  %1568 = vmatmul.mubr.f32.gmra.mrb[0].mxu0 %v1370
  %v1569 = vpop.f32.mrb[0].mxu0
  %v1570 = vadd.f32 %v1309, %v1569
  %v1571 = vpop.f32.mrb[0].mxu0
  %1572 = vmatprep.mubr.f32.mxu0 0.0
  %1573 = vmatmul.mubr.f32.gmra.mrb[0].mxu0 %v1373
  %v1574 = vpop.f32.mrb[0].mxu0
  %v1575 = vadd.f32 %v1309, %v1574
  %v1576 = vpop.f32.mrb[0].mxu0
  %1577 = vmatprep.mubr.f32.mxu0 0.0
  %1578 = vmatmul.mubr.f32.gmra.mrb[0].mxu0 %v1376
  %v1579 = vpop.f32.mrb[0].mxu0
  %v1580 = vadd.f32 %v1309, %v1579
  %v1581 = vpop.f32.mrb[0].mxu0
  %1582 = vmatprep.mubr.f32.mxu0 0.0
  %1583 = vmatmul.mubr.f32.gmra.mrb[0].mxu0 %v1379
  %v1584 = vpop.f32.mrb[0].mxu0
  %v1585 = vadd.f32 %v1309, %v1584
  %v1586 = vpop.f32.mrb[0].mxu0
  %1587 = vmatprep.mubr.f32.mxu0 0.0
  %1588 = vmatmul.mubr.f32.gmra.mrb[0].mxu0 %v1382
  %v1589 = vpop.f32.mrb[0].mxu0
  %v1590 = vadd.f32 %v1309, %v1589
  %v1591 = vpop.f32.mrb[0].mxu0
  %1592 = vmatprep.mubr.f32.mxu0 0.0
  %1593 = vmatmul.mubr.f32.gmra.mrb[0].mxu0 %v1385
  %v1594 = vpop.f32.mrb[0].mxu0
  %v1595 = vadd.f32 %v1309, %v1594
  %v1596 = vpop.f32.mrb[0].mxu0
  %1597 = vmatprep.mubr.f32.mxu0 0.0
  %1598 = vmatmul.mubr.f32.gmra.mrb[0].mxu0 %v1388
  %v1599 = vpop.f32.mrb[0].mxu0
  %v1600 = vadd.f32 %v1309, %v1599
  %v1601 = vpop.f32.mrb[0].mxu0
  %1602 = vmatprep.mubr.f32.mxu0 0.0
  %1603 = vmatmul.mubr.f32.gmra.mrb[0].mxu0 %v1391
  %v1604 = vpop.f32.mrb[0].mxu0
  %v1605 = vadd.f32 %v1309, %v1604
  %v1606 = vpop.f32.mrb[0].mxu0
  %1607 = vmatprep.mubr.f32.mxu0 0.0
  %1608 = vmatmul.mubr.f32.gmra.mrb[0].mxu0 %v1394
  %v1609 = vpop.f32.mrb[0].mxu0
  %v1610 = vadd.f32 %v1309, %v1609
  %v1611 = vpop.f32.mrb[0].mxu0
  %1612 = vmatprep.mubr.f32.mxu0 0.0
  %1613 = vmatmul.mubr.f32.gmra.mrb[0].mxu0 %v1397
  %v1614 = vpop.f32.mrb[0].mxu0
  %v1615 = vadd.f32 %v1309, %v1614
  %v1616 = vpop.f32.mrb[0].mxu0
  %1617 = vmatprep.mubr.f32.mxu0 0.0
  %1618 = vmatmul.mubr.f32.gmra.mrb[0].mxu0 %v1400
  %v1619 = vpop.f32.mrb[0].mxu0
  %v1620 = vadd.f32 %v1309, %v1619
  %v1621 = vpop.f32.mrb[0].mxu0
  %1622 = vmatprep.mubr.f32.mxu0 0.0
  %1623 = vmatmul.mubr.f32.gmra.mrb[0].mxu0 %v1403
  %v1624 = vpop.f32.mrb[0].mxu0
  %v1625 = vadd.f32 %v1309, %v1624
  %v1626 = vpop.f32.mrb[0].mxu0
  %1627 = vmatprep.mubr.f32.mxu0 0.0
  %1628 = vmatmul.mubr.f32.gmra.mrb[0].mxu0 %v1406
  %v1629 = vpop.f32.mrb[0].mxu0
  %v1630 = vadd.f32 %v1309, %v1629
  %v1631 = vpop.f32.mrb[0].mxu0
  %1632 = vdwg.mxu0
  %v1633 = vmax.f32 %v1475, 0.0
  %v1634 = vmax.f32 %v1480, 0.0
  %v1635 = vmax.f32 %v1485, 0.0
  %v1636 = vmax.f32 %v1490, 0.0
  %v1637 = vmax.f32 %v1495, 0.0
  %v1638 = vmax.f32 %v1500, 0.0
  %v1639 = vmax.f32 %v1505, 0.0
  %v1640 = vmax.f32 %v1510, 0.0
  %v1641 = vmax.f32 %v1515, 0.0
  %v1642 = vmax.f32 %v1520, 0.0
  %v1643 = vmax.f32 %v1525, 0.0
  %v1644 = vmax.f32 %v1530, 0.0
  %v1645 = vmax.f32 %v1535, 0.0
  %v1646 = vmax.f32 %v1540, 0.0
  %v1647 = vmax.f32 %v1545, 0.0
  %v1648 = vmax.f32 %v1550, 0.0
  %v1649 = vmax.f32 %v1555, 0.0
  %v1650 = vmax.f32 %v1560, 0.0
  %v1651 = vmax.f32 %v1565, 0.0
  %v1652 = vmax.f32 %v1570, 0.0
  %v1653 = vmax.f32 %v1575, 0.0
  %v1654 = vmax.f32 %v1580, 0.0
  %v1655 = vmax.f32 %v1585, 0.0
  %v1656 = vmax.f32 %v1590, 0.0
  %v1657 = vmax.f32 %v1595, 0.0
  %v1658 = vmax.f32 %v1600, 0.0
  %v1659 = vmax.f32 %v1605, 0.0
  %v1660 = vmax.f32 %v1610, 0.0
  %v1661 = vmax.f32 %v1615, 0.0
  %v1662 = vmax.f32 %v1620, 0.0
  %v1663 = vmax.f32 %v1625, 0.0
  %v1664 = vmax.f32 %v1630, 0.0
  %v1665 = vmin.f32 %v1633, 1.0
  %v1666 = vmin.f32 %v1634, 1.0
  %v1667 = vmin.f32 %v1635, 1.0
  %v1668 = vmin.f32 %v1636, 1.0
  %v1669 = vmin.f32 %v1637, 1.0
  %v1670 = vmin.f32 %v1638, 1.0
  %v1671 = vmin.f32 %v1639, 1.0
  %v1672 = vmin.f32 %v1640, 1.0
  %v1673 = vmin.f32 %v1641, 1.0
  %v1674 = vmin.f32 %v1642, 1.0
  %v1675 = vmin.f32 %v1643, 1.0
  %v1676 = vmin.f32 %v1644, 1.0
  %v1677 = vmin.f32 %v1645, 1.0
  %v1678 = vmin.f32 %v1646, 1.0
  %v1679 = vmin.f32 %v1647, 1.0
  %v1680 = vmin.f32 %v1648, 1.0
  %v1681 = vmin.f32 %v1649, 1.0
  %v1682 = vmin.f32 %v1650, 1.0
  %v1683 = vmin.f32 %v1651, 1.0
  %v1684 = vmin.f32 %v1652, 1.0
  %v1685 = vmin.f32 %v1653, 1.0
  %v1686 = vmin.f32 %v1654, 1.0
  %v1687 = vmin.f32 %v1655, 1.0
  %v1688 = vmin.f32 %v1656, 1.0
  %v1689 = vmin.f32 %v1657, 1.0
  %v1690 = vmin.f32 %v1658, 1.0
  %v1691 = vmin.f32 %v1659, 1.0
  %v1692 = vmin.f32 %v1660, 1.0
  %v1693 = vmin.f32 %v1661, 1.0
  %v1694 = vmin.f32 %v1662, 1.0
  %v1695 = vmin.f32 %v1663, 1.0
  %v1696 = vmin.f32 %v1664, 1.0
  %v1697 = vld [vmem:[%s5] sm:$0x1]
  %v1699 = vlaneseq
  %v1700 = vshrl.u32 %v1699, 7
  %v1701 = vsub.s32 0, %v1700
  %v1702 = vrot.slane %v1697, %v1701
  %v1704 = vmul.f32 %v1665, %v1702
  %v1705 = vmul.f32 %v1666, %v1702
  %v1706 = vmul.f32 %v1667, %v1702
  %v1707 = vmul.f32 %v1668, %v1702
  %v1708 = vmul.f32 %v1669, %v1702
  %v1709 = vmul.f32 %v1670, %v1702
  %v1710 = vmul.f32 %v1671, %v1702
  %v1711 = vmul.f32 %v1672, %v1702
  %v1712 = vmul.f32 %v1673, %v1702
  %v1713 = vmul.f32 %v1674, %v1702
  %v1714 = vmul.f32 %v1675, %v1702
  %v1715 = vmul.f32 %v1676, %v1702
  %v1716 = vmul.f32 %v1677, %v1702
  %v1717 = vmul.f32 %v1678, %v1702
  %v1718 = vmul.f32 %v1679, %v1702
  %v1719 = vmul.f32 %v1680, %v1702
  %v1720 = vmul.f32 %v1681, %v1702
  %v1721 = vmul.f32 %v1682, %v1702
  %v1722 = vmul.f32 %v1683, %v1702
  %v1723 = vmul.f32 %v1684, %v1702
  %v1724 = vmul.f32 %v1685, %v1702
  %v1725 = vmul.f32 %v1686, %v1702
  %v1726 = vmul.f32 %v1687, %v1702
  %v1727 = vmul.f32 %v1688, %v1702
  %v1728 = vmul.f32 %v1689, %v1702
  %v1729 = vmul.f32 %v1690, %v1702
  %v1730 = vmul.f32 %v1691, %v1702
  %v1731 = vmul.f32 %v1692, %v1702
  %v1732 = vmul.f32 %v1693, %v1702
  %v1733 = vmul.f32 %v1694, %v1702
  %v1734 = vmul.f32 %v1695, %v1702
  %v1735 = vmul.f32 %v1696, %v1702
  %v1736 = vsel %vm1311, %v1704, 0.0
  %1737 = vadd.xlane.f32.xlu0 %v1736
  %v1738 = vpop.xlane.xlu0 %1737
  %v1739 = vsel %vm1311, %v1705, 0.0
  %1740 = vadd.xlane.f32.xlu0 %v1739
  %v1741 = vpop.xlane.xlu0 %1740
  %v1742 = vsel %vm1311, %v1706, 0.0
  %1743 = vadd.xlane.f32.xlu0 %v1742
  %v1744 = vpop.xlane.xlu0 %1743
  %v1745 = vsel %vm1311, %v1707, 0.0
  %1746 = vadd.xlane.f32.xlu0 %v1745
  %v1747 = vpop.xlane.xlu0 %1746
  %v1748 = vsel %vm1311, %v1708, 0.0
  %1749 = vadd.xlane.f32.xlu0 %v1748
  %v1750 = vpop.xlane.xlu0 %1749
  %v1751 = vsel %vm1311, %v1709, 0.0
  %1752 = vadd.xlane.f32.xlu0 %v1751
  %v1753 = vpop.xlane.xlu0 %1752
  %v1754 = vsel %vm1311, %v1710, 0.0
  %1755 = vadd.xlane.f32.xlu0 %v1754
  %v1756 = vpop.xlane.xlu0 %1755
  %v1757 = vsel %vm1311, %v1711, 0.0
  %1758 = vadd.xlane.f32.xlu0 %v1757
  %v1759 = vpop.xlane.xlu0 %1758
  %v1760 = vsel %vm1311, %v1712, 0.0
  %1761 = vadd.xlane.f32.xlu0 %v1760
  %v1762 = vpop.xlane.xlu0 %1761
  %v1763 = vsel %vm1311, %v1713, 0.0
  %1764 = vadd.xlane.f32.xlu0 %v1763
  %v1765 = vpop.xlane.xlu0 %1764
  %v1766 = vsel %vm1311, %v1714, 0.0
  %1767 = vadd.xlane.f32.xlu0 %v1766
  %v1768 = vpop.xlane.xlu0 %1767
  %v1769 = vsel %vm1311, %v1715, 0.0
  %1770 = vadd.xlane.f32.xlu0 %v1769
  %v1771 = vpop.xlane.xlu0 %1770
  %v1772 = vsel %vm1311, %v1716, 0.0
  %1773 = vadd.xlane.f32.xlu0 %v1772
  %v1774 = vpop.xlane.xlu0 %1773
  %v1775 = vsel %vm1311, %v1717, 0.0
  %1776 = vadd.xlane.f32.xlu0 %v1775
  %v1777 = vpop.xlane.xlu0 %1776
  %v1778 = vsel %vm1311, %v1718, 0.0
  %1779 = vadd.xlane.f32.xlu0 %v1778
  %v1780 = vpop.xlane.xlu0 %1779
  %v1781 = vsel %vm1311, %v1719, 0.0
  %1782 = vadd.xlane.f32.xlu0 %v1781
  %v1783 = vpop.xlane.xlu0 %1782
  %v1784 = vsel %vm1311, %v1720, 0.0
  %1785 = vadd.xlane.f32.xlu0 %v1784
  %v1786 = vpop.xlane.xlu0 %1785
  %v1787 = vsel %vm1311, %v1721, 0.0
  %1788 = vadd.xlane.f32.xlu0 %v1787
  %v1789 = vpop.xlane.xlu0 %1788
  %v1790 = vsel %vm1311, %v1722, 0.0
  %1791 = vadd.xlane.f32.xlu0 %v1790
  %v1792 = vpop.xlane.xlu0 %1791
  %v1793 = vsel %vm1311, %v1723, 0.0
  %1794 = vadd.xlane.f32.xlu0 %v1793
  %v1795 = vpop.xlane.xlu0 %1794
  %v1796 = vsel %vm1311, %v1724, 0.0
  %1797 = vadd.xlane.f32.xlu0 %v1796
  %v1798 = vpop.xlane.xlu0 %1797
  %v1799 = vsel %vm1311, %v1725, 0.0
  %1800 = vadd.xlane.f32.xlu0 %v1799
  %v1801 = vpop.xlane.xlu0 %1800
  %v1802 = vsel %vm1311, %v1726, 0.0
  %1803 = vadd.xlane.f32.xlu0 %v1802
  %v1804 = vpop.xlane.xlu0 %1803
  %v1805 = vsel %vm1311, %v1727, 0.0
  %1806 = vadd.xlane.f32.xlu0 %v1805
  %v1807 = vpop.xlane.xlu0 %1806
  %v1808 = vsel %vm1311, %v1728, 0.0
  %1809 = vadd.xlane.f32.xlu0 %v1808
  %v1810 = vpop.xlane.xlu0 %1809
  %v1811 = vsel %vm1311, %v1729, 0.0
  %1812 = vadd.xlane.f32.xlu0 %v1811
  %v1813 = vpop.xlane.xlu0 %1812
  %v1814 = vsel %vm1311, %v1730, 0.0
  %1815 = vadd.xlane.f32.xlu0 %v1814
  %v1816 = vpop.xlane.xlu0 %1815
  %v1817 = vsel %vm1311, %v1731, 0.0
  %1818 = vadd.xlane.f32.xlu0 %v1817
  %v1819 = vpop.xlane.xlu0 %1818
  %v1820 = vsel %vm1311, %v1732, 0.0
  %1821 = vadd.xlane.f32.xlu0 %v1820
  %v1822 = vpop.xlane.xlu0 %1821
  %v1823 = vsel %vm1311, %v1733, 0.0
  %1824 = vadd.xlane.f32.xlu0 %v1823
  %v1825 = vpop.xlane.xlu0 %1824
  %v1826 = vsel %vm1311, %v1734, 0.0
  %1827 = vadd.xlane.f32.xlu0 %v1826
  %v1828 = vpop.xlane.xlu0 %1827
  %v1829 = vsel %vm1311, %v1735, 0.0
  %1830 = vadd.xlane.f32.xlu0 %v1829
  %v1831 = vpop.xlane.xlu0 %1830
  %v1832 = vld [vmem:[#allocation2] sm:$0x1]
  %v1834 = vlaneseq
  %v1835 = vshrl.u32 %v1834, 7
  %v1836 = vsub.s32 0, %v1835
  %v1837 = vrot.slane %v1832, %v1836
  %v1839 = vadd.f32 %v1738, %v1837
  %v1840 = vadd.f32 %v1741, %v1837
  %v1841 = vadd.f32 %v1744, %v1837
  %v1842 = vadd.f32 %v1747, %v1837
  %v1843 = vadd.f32 %v1750, %v1837
  %v1844 = vadd.f32 %v1753, %v1837
  %v1845 = vadd.f32 %v1756, %v1837
  %v1846 = vadd.f32 %v1759, %v1837
  %v1847 = vadd.f32 %v1762, %v1837
  %v1848 = vadd.f32 %v1765, %v1837
  %v1849 = vadd.f32 %v1768, %v1837
  %v1850 = vadd.f32 %v1771, %v1837
  %v1851 = vadd.f32 %v1774, %v1837
  %v1852 = vadd.f32 %v1777, %v1837
  %v1853 = vadd.f32 %v1780, %v1837
  %v1854 = vadd.f32 %v1783, %v1837
  %v1855 = vadd.f32 %v1786, %v1837
  %v1856 = vadd.f32 %v1789, %v1837
  %v1857 = vadd.f32 %v1792, %v1837
  %v1858 = vadd.f32 %v1795, %v1837
  %v1859 = vadd.f32 %v1798, %v1837
  %v1860 = vadd.f32 %v1801, %v1837
  %v1861 = vadd.f32 %v1804, %v1837
  %v1862 = vadd.f32 %v1807, %v1837
  %v1863 = vadd.f32 %v1810, %v1837
  %v1864 = vadd.f32 %v1813, %v1837
  %v1865 = vadd.f32 %v1816, %v1837
  %v1866 = vadd.f32 %v1819, %v1837
  %v1867 = vadd.f32 %v1822, %v1837
  %v1868 = vadd.f32 %v1825, %v1837
  %v1869 = vadd.f32 %v1828, %v1837
  %v1870 = vadd.f32 %v1831, %v1837
  %v1871 = vmul.f32 %v1839, 0.0025
  %v1872 = vmul.f32 %v1840, 0.0025
  %v1873 = vmul.f32 %v1841, 0.0025
  %v1874 = vmul.f32 %v1842, 0.0025
  %v1875 = vmul.f32 %v1843, 0.0025
  %v1876 = vmul.f32 %v1844, 0.0025
  %v1877 = vmul.f32 %v1845, 0.0025
  %v1878 = vmul.f32 %v1846, 0.0025
  %v1879 = vmul.f32 %v1847, 0.0025
  %v1880 = vmul.f32 %v1848, 0.0025
  %v1881 = vmul.f32 %v1849, 0.0025
  %v1882 = vmul.f32 %v1850, 0.0025
  %v1883 = vmul.f32 %v1851, 0.0025
  %v1884 = vmul.f32 %v1852, 0.0025
  %v1885 = vmul.f32 %v1853, 0.0025
  %v1886 = vmul.f32 %v1854, 0.0025
  %v1887 = vmul.f32 %v1855, 0.0025
  %v1888 = vmul.f32 %v1856, 0.0025
  %v1889 = vmul.f32 %v1857, 0.0025
  %v1890 = vmul.f32 %v1858, 0.0025
  %v1891 = vmul.f32 %v1859, 0.0025
  %v1892 = vmul.f32 %v1860, 0.0025
  %v1893 = vmul.f32 %v1861, 0.0025
  %v1894 = vmul.f32 %v1862, 0.0025
  %v1895 = vmul.f32 %v1863, 0.0025
  %v1896 = vmul.f32 %v1864, 0.0025
  %v1897 = vmul.f32 %v1865, 0.0025
  %v1898 = vmul.f32 %v1866, 0.0025
  %v1899 = vmul.f32 %v1867, 0.0025
  %v1900 = vmul.f32 %v1868, 0.0025
  %v1901 = vmul.f32 %v1869, 0.0025
  %v1902 = vmul.f32 %v1870, 0.0025
  %v1903 = vsub.f32 0.0, %v1871
  %v1904 = vsub.f32 0.0, %v1872
  %v1905 = vsub.f32 0.0, %v1873
  %v1906 = vsub.f32 0.0, %v1874
  %v1907 = vsub.f32 0.0, %v1875
  %v1908 = vsub.f32 0.0, %v1876
  %v1909 = vsub.f32 0.0, %v1877
  %v1910 = vsub.f32 0.0, %v1878
  %v1911 = vsub.f32 0.0, %v1879
  %v1912 = vsub.f32 0.0, %v1880
  %v1913 = vsub.f32 0.0, %v1881
  %v1914 = vsub.f32 0.0, %v1882
  %v1915 = vsub.f32 0.0, %v1883
  %v1916 = vsub.f32 0.0, %v1884
  %v1917 = vsub.f32 0.0, %v1885
  %v1918 = vsub.f32 0.0, %v1886
  %v1919 = vsub.f32 0.0, %v1887
  %v1920 = vsub.f32 0.0, %v1888
  %v1921 = vsub.f32 0.0, %v1889
  %v1922 = vsub.f32 0.0, %v1890
  %v1923 = vsub.f32 0.0, %v1891
  %v1924 = vsub.f32 0.0, %v1892
  %v1925 = vsub.f32 0.0, %v1893
  %v1926 = vsub.f32 0.0, %v1894
  %v1927 = vsub.f32 0.0, %v1895
  %v1928 = vsub.f32 0.0, %v1896
  %v1929 = vsub.f32 0.0, %v1897
  %v1930 = vsub.f32 0.0, %v1898
  %v1931 = vsub.f32 0.0, %v1899
  %v1932 = vsub.f32 0.0, %v1900
  %v1933 = vsub.f32 0.0, %v1901
  %v1934 = vsub.f32 0.0, %v1902
  %v1935 = vmul.f32 %v1903, 1.442695
  %v1936 = vpow.pop %v1935
  %v1937 = vmul.f32 %v1904, 1.442695
  %v1938 = vpow.pop %v1937
  %v1939 = vmul.f32 %v1905, 1.442695
  %v1940 = vpow.pop %v1939
  %v1941 = vmul.f32 %v1906, 1.442695
  %v1942 = vpow.pop %v1941
  %v1943 = vmul.f32 %v1907, 1.442695
  %v1944 = vpow.pop %v1943
  %v1945 = vmul.f32 %v1908, 1.442695
  %v1946 = vpow.pop %v1945
  %v1947 = vmul.f32 %v1909, 1.442695
  %v1948 = vpow.pop %v1947
  %v1949 = vmul.f32 %v1910, 1.442695
  %v1950 = vpow.pop %v1949
  %v1951 = vmul.f32 %v1911, 1.442695
  %v1952 = vpow.pop %v1951
  %v1953 = vmul.f32 %v1912, 1.442695
  %v1954 = vpow.pop %v1953
  %v1955 = vmul.f32 %v1913, 1.442695
  %v1956 = vpow.pop %v1955
  %v1957 = vmul.f32 %v1914, 1.442695
  %v1958 = vpow.pop %v1957
  %v1959 = vmul.f32 %v1915, 1.442695
  %v1960 = vpow.pop %v1959
  %v1961 = vmul.f32 %v1916, 1.442695
  %v1962 = vpow.pop %v1961
  %v1963 = vmul.f32 %v1917, 1.442695
  %v1964 = vpow.pop %v1963
  %v1965 = vmul.f32 %v1918, 1.442695
  %v1966 = vpow.pop %v1965
  %v1967 = vmul.f32 %v1919, 1.442695
  %v1968 = vpow.pop %v1967
  %v1969 = vmul.f32 %v1920, 1.442695
  %v1970 = vpow.pop %v1969
  %v1971 = vmul.f32 %v1921, 1.442695
  %v1972 = vpow.pop %v1971
  %v1973 = vmul.f32 %v1922, 1.442695
  %v1974 = vpow.pop %v1973
  %v1975 = vmul.f32 %v1923, 1.442695
  %v1976 = vpow.pop %v1975
  %v1977 = vmul.f32 %v1924, 1.442695
  %v1978 = vpow.pop %v1977
  %v1979 = vmul.f32 %v1925, 1.442695
  %v1980 = vpow.pop %v1979
  %v1981 = vmul.f32 %v1926, 1.442695
  %v1982 = vpow.pop %v1981
  %v1983 = vmul.f32 %v1927, 1.442695
  %v1984 = vpow.pop %v1983
  %v1985 = vmul.f32 %v1928, 1.442695
  %v1986 = vpow.pop %v1985
  %v1987 = vmul.f32 %v1929, 1.442695
  %v1988 = vpow.pop %v1987
  %v1989 = vmul.f32 %v1930, 1.442695
  %v1990 = vpow.pop %v1989
  %v1991 = vmul.f32 %v1931, 1.442695
  %v1992 = vpow.pop %v1991
  %v1993 = vmul.f32 %v1932, 1.442695
  %v1994 = vpow.pop %v1993
  %v1995 = vmul.f32 %v1933, 1.442695
  %v1996 = vpow.pop %v1995
  %v1997 = vmul.f32 %v1934, 1.442695
  %v1998 = vpow.pop %v1997
  %v1999 = vadd.f32 %v1936, 1.0
  %v2000 = vadd.f32 %v1938, 1.0
  %v2001 = vadd.f32 %v1940, 1.0
  %v2002 = vadd.f32 %v1942, 1.0
  %v2003 = vadd.f32 %v1944, 1.0
  %v2004 = vadd.f32 %v1946, 1.0
  %v2005 = vadd.f32 %v1948, 1.0
  %v2006 = vadd.f32 %v1950, 1.0
  %v2007 = vadd.f32 %v1952, 1.0
  %v2008 = vadd.f32 %v1954, 1.0
  %v2009 = vadd.f32 %v1956, 1.0
  %v2010 = vadd.f32 %v1958, 1.0
  %v2011 = vadd.f32 %v1960, 1.0
  %v2012 = vadd.f32 %v1962, 1.0
  %v2013 = vadd.f32 %v1964, 1.0
  %v2014 = vadd.f32 %v1966, 1.0
  %v2015 = vadd.f32 %v1968, 1.0
  %v2016 = vadd.f32 %v1970, 1.0
  %v2017 = vadd.f32 %v1972, 1.0
  %v2018 = vadd.f32 %v1974, 1.0
  %v2019 = vadd.f32 %v1976, 1.0
  %v2020 = vadd.f32 %v1978, 1.0
  %v2021 = vadd.f32 %v1980, 1.0
  %v2022 = vadd.f32 %v1982, 1.0
  %v2023 = vadd.f32 %v1984, 1.0
  %v2024 = vadd.f32 %v1986, 1.0
  %v2025 = vadd.f32 %v1988, 1.0
  %v2026 = vadd.f32 %v1990, 1.0
  %v2027 = vadd.f32 %v1992, 1.0
  %v2028 = vadd.f32 %v1994, 1.0
  %v2029 = vadd.f32 %v1996, 1.0
  %v2030 = vadd.f32 %v1998, 1.0
  %v2031 = vrcp.pop %v1999
  %v2032 = vmul.f32 1.0, %v2031
  %v2033 = vrcp.pop %v2000
  %v2034 = vmul.f32 1.0, %v2033
  %v2035 = vrcp.pop %v2001
  %v2036 = vmul.f32 1.0, %v2035
  %v2037 = vrcp.pop %v2002
  %v2038 = vmul.f32 1.0, %v2037
  %v2039 = vrcp.pop %v2003
  %v2040 = vmul.f32 1.0, %v2039
  %v2041 = vrcp.pop %v2004
  %v2042 = vmul.f32 1.0, %v2041
  %v2043 = vrcp.pop %v2005
  %v2044 = vmul.f32 1.0, %v2043
  %v2045 = vrcp.pop %v2006
  %v2046 = vmul.f32 1.0, %v2045
  %v2047 = vrcp.pop %v2007
  %v2048 = vmul.f32 1.0, %v2047
  %v2049 = vrcp.pop %v2008
  %v2050 = vmul.f32 1.0, %v2049
  %v2051 = vrcp.pop %v2009
  %v2052 = vmul.f32 1.0, %v2051
  %v2053 = vrcp.pop %v2010
  %v2054 = vmul.f32 1.0, %v2053
  %v2055 = vrcp.pop %v2011
  %v2056 = vmul.f32 1.0, %v2055
  %v2057 = vrcp.pop %v2012
  %v2058 = vmul.f32 1.0, %v2057
  %v2059 = vrcp.pop %v2013
  %v2060 = vmul.f32 1.0, %v2059
  %v2061 = vrcp.pop %v2014
  %v2062 = vmul.f32 1.0, %v2061
  %v2063 = vrcp.pop %v2015
  %v2064 = vmul.f32 1.0, %v2063
  %v2065 = vrcp.pop %v2016
  %v2066 = vmul.f32 1.0, %v2065
  %v2067 = vrcp.pop %v2017
  %v2068 = vmul.f32 1.0, %v2067
  %v2069 = vrcp.pop %v2018
  %v2070 = vmul.f32 1.0, %v2069
  %v2071 = vrcp.pop %v2019
  %v2072 = vmul.f32 1.0, %v2071
  %v2073 = vrcp.pop %v2020
  %v2074 = vmul.f32 1.0, %v2073
  %v2075 = vrcp.pop %v2021
  %v2076 = vmul.f32 1.0, %v2075
  %v2077 = vrcp.pop %v2022
  %v2078 = vmul.f32 1.0, %v2077
  %v2079 = vrcp.pop %v2023
  %v2080 = vmul.f32 1.0, %v2079
  %v2081 = vrcp.pop %v2024
  %v2082 = vmul.f32 1.0, %v2081
  %v2083 = vrcp.pop %v2025
  %v2084 = vmul.f32 1.0, %v2083
  %v2085 = vrcp.pop %v2026
  %v2086 = vmul.f32 1.0, %v2085
  %v2087 = vrcp.pop %v2027
  %v2088 = vmul.f32 1.0, %v2087
  %v2089 = vrcp.pop %v2028
  %v2090 = vmul.f32 1.0, %v2089
  %v2091 = vrcp.pop %v2029
  %v2092 = vmul.f32 1.0, %v2091
  %v2093 = vrcp.pop %v2030
  %v2094 = vmul.f32 1.0, %v2093
  %vm2095 = vcmask 7168
  %2096 = vst.msk [vmem:[%s7] sm:$0xff] %vm2095, %v2032
  %2097 = vst.msk [vmem:[%s7 + $0x8] sm:$0xff] %vm2095, %v2034
  %2098 = vst.msk [vmem:[%s7 + $0x10] sm:$0xff] %vm2095, %v2036
  %2099 = vst.msk [vmem:[%s7 + $0x18] sm:$0xff] %vm2095, %v2038
  %2100 = vst.msk [vmem:[%s7 + $0x20] sm:$0xff] %vm2095, %v2040
  %2101 = vst.msk [vmem:[%s7 + $0x28] sm:$0xff] %vm2095, %v2042
  %2102 = vst.msk [vmem:[%s7 + $0x30] sm:$0xff] %vm2095, %v2044
  %2103 = vst.msk [vmem:[%s7 + $0x38] sm:$0xff] %vm2095, %v2046
  %2104 = vst.msk [vmem:[%s7 + $0x40] sm:$0xff] %vm2095, %v2048
  %2105 = vst.msk [vmem:[%s7 + $0x48] sm:$0xff] %vm2095, %v2050
  %2106 = vst.msk [vmem:[%s7 + $0x50] sm:$0xff] %vm2095, %v2052
  %2107 = vst.msk [vmem:[%s7 + $0x58] sm:$0xff] %vm2095, %v2054
  %2108 = vst.msk [vmem:[%s7 + $0x60] sm:$0xff] %vm2095, %v2056
  %2109 = vst.msk [vmem:[%s7 + $0x68] sm:$0xff] %vm2095, %v2058
  %2110 = vst.msk [vmem:[%s7 + $0x70] sm:$0xff] %vm2095, %v2060
  %2111 = vst.msk [vmem:[%s7 + $0x78] sm:$0xff] %vm2095, %v2062
  %2112 = vst.msk [vmem:[%s7 + $0x80] sm:$0xff] %vm2095, %v2064
  %2113 = vst.msk [vmem:[%s7 + $0x88] sm:$0xff] %vm2095, %v2066
  %2114 = vst.msk [vmem:[%s7 + $0x90] sm:$0xff] %vm2095, %v2068
  %2115 = vst.msk [vmem:[%s7 + $0x98] sm:$0xff] %vm2095, %v2070
  %2116 = vst.msk [vmem:[%s7 + $0xa0] sm:$0xff] %vm2095, %v2072
  %2117 = vst.msk [vmem:[%s7 + $0xa8] sm:$0xff] %vm2095, %v2074
  %2118 = vst.msk [vmem:[%s7 + $0xb0] sm:$0xff] %vm2095, %v2076
  %2119 = vst.msk [vmem:[%s7 + $0xb8] sm:$0xff] %vm2095, %v2078
  %2120 = vst.msk [vmem:[%s7 + $0xc0] sm:$0xff] %vm2095, %v2080
  %2121 = vst.msk [vmem:[%s7 + $0xc8] sm:$0xff] %vm2095, %v2082
  %2122 = vst.msk [vmem:[%s7 + $0xd0] sm:$0xff] %vm2095, %v2084
  %2123 = vst.msk [vmem:[%s7 + $0xd8] sm:$0xff] %vm2095, %v2086
  %2124 = vst.msk [vmem:[%s7 + $0xe0] sm:$0xff] %vm2095, %v2088
  %2125 = vst.msk [vmem:[%s7 + $0xe8] sm:$0xff] %vm2095, %v2090
  %2126 = vst.msk [vmem:[%s7 + $0xf0] sm:$0xff] %vm2095, %v2092
  %2127 = vst.msk [vmem:[%s7 + $0xf8] sm:$0xff] %vm2095, %v2094
  // Predicated region
  $region30: #{tpu_custom_call.1} parent=0 // pred_check
    _
  $region31: #{tpu_custom_call.1} parent=0 // pred_check_branch
    %2129 = sbr.rel (0) target = $region33
  $region32: #{tpu_custom_call.1} parent=0 // pred_region
    _
  $region33: #{tpu_custom_call.1} parent=0 // pred_fallthru
    _
  // Predicated region
  $region34: #{tpu_custom_call.1} parent=0 // pred_check
    _
  $region35: #{tpu_custom_call.1} parent=0 // pred_check_branch
    %2131 = sbr.rel (0) target = $region37
  $region36: #{tpu_custom_call.1} parent=0 // pred_region
    _
  $region37: #{tpu_custom_call.1} parent=0 // pred_fallthru
    _

</llo_original>
